<compile_context>
chip_gen: v7x
topology: tpu7x:2x2x1
jax: 0.10.0
libtpu: 0.0.40
codegen_flags: <defaults>
</compile_context>

<pallas_src>
import functools

import numpy as np
import jax
import jax.numpy as jnp
from jax.experimental import pallas as pl
from jax.experimental.pallas import tpu as pltpu


# ----------------------------- Pallas kernels -------------------------------

def _enc1_kernel(adj_ref, x_ref, w1_ref, w23_ref, zw_ref):
    """zw_tile = relu((adj_tile @ x) @ W1) @ [W2 | W3]."""
    f32, bf16 = jnp.float32, jnp.bfloat16
    # (adj @ x) @ W1 — this order minimizes the N^2-scaled work when D <= H1.
    # TODO(synk): when D > H1, precompute t = x @ W1 once and feed t instead of x.
    ax = jnp.dot(adj_ref[...], x_ref[...], preferred_element_type=f32)
    z = jnp.maximum(jnp.dot(ax.astype(bf16), w1_ref[...],
                            preferred_element_type=f32), 0.0)
    zw = jnp.dot(z.astype(bf16), w23_ref[...], preferred_element_type=f32)
    zw_ref[...] = zw.astype(zw_ref.dtype)


def _enc2_kernel(adj_ref, zw_ref, noise_ref, zr_ref):
    """zs_tile = noise*exp(logstd)+mean with [mean|logstd] = adj_tile @ zw; emit [zs|relu(zs)]."""
    f32 = jnp.float32
    h2 = noise_ref.shape[1]
    ml = jnp.dot(adj_ref[...], zw_ref[...], preferred_element_type=f32)   # (tile, 2*H2)
    # lane slice at h2 — fine while 2*H2 <= 128; keep halves 128-aligned if H2 ever grows.
    mean, logstd = ml[:, :h2], ml[:, h2:]
    zs = noise_ref[...] * jnp.exp(logstd) + mean        # f32 VPU/EUP (v5e has no bf16 VPU)
    zr = jnp.concatenate([zs, jnp.maximum(zs, 0.0)], axis=1)   # relu hoisted per-node
    zr_ref[...] = zr.astype(zr_ref.dtype)


def _dec_kernel(eidx_ref, zr_ref, va_ref, vb_ref, w3b_ref, out_ref):
    """Merged one-hot edge gather + folded decoder; lane-dense (1, TE) sigmoid output."""
    f32 = jnp.float32
    te = out_ref.shape[1]
    n = zr_ref.shape[0]
    h2 = va_ref.shape[1]
    # One merged one-hot selector: rows [0, te) pick edge endpoints i, rows [te, 2*te) pick j.
    # TODO(synk): for very large N, switch to an SMEM scalar-prefetch + DMA gather instead
    #   of the one-hot matmul (keeps the (2*TE, N) selector off the MXU entirely).
    idx = jnp.concatenate([eidx_ref[:, 0:1], eidx_ref[:, 1:2]], axis=0)   # (2*te, 1)
    col = jax.lax.broadcasted_iota(jnp.int32, (2 * te, n), 1)
    sel = (col == idx).astype(zr_ref.dtype)                               # bf16 one-hots
    g = jnp.dot(sel, zr_ref[...], preferred_element_type=f32)             # (2*te, 2*H2)
    gi, gj = g[:te], g[te:]
    zi, ri = gi[:, :h2], gi[:, h2:]
    zj, rj = gj[:, :h2], gj[:, h2:]
    # Folded decoder: logit = (zi*zj)@w3b + relu(zi)@va + relu(zj)@vb, all computed in
    # transposed form so the result is a lane-dense (1, te) row.
    dn = (((1,), (1,)), ((), ()))
    logits = (jax.lax.dot_general(w3b_ref[...], zi * zj, dn, preferred_element_type=f32)
              + jax.lax.dot_general(va_ref[...], ri, dn, preferred_element_type=f32)
              + jax.lax.dot_general(vb_ref[...], rj, dn, preferred_element_type=f32))
    out_ref[...] = jax.nn.sigmoid(logits)


# ------------------------------ JAX wrappers ---------------------------------

_VMEM_CAP = 48 * 1024 * 1024   # below v7x's 64 MiB physical per-TC VMEM (128 MiB on v5e/v6e)


def _pick_tile(n, target):
    """Largest divisor of n that is <= target and a multiple of 8 (else n itself)."""
    if n <= target:
        return n
    for t in range(min(n, target), 7, -1):
        if n % t == 0 and t % 8 == 0:
            return t
    return n


def prepare_vgae(params, adj):
    """One-time host prep: bf16 casts, W23 concat, algebraic decoder fold."""
    h2 = params["enc_weight_2"].shape[1]
    w_two, w_three = params["weight_two"], params["weight_three"]
    return {
        "adj": adj.astype(jnp.bfloat16),                                   # (N, N)
        "w1": params["enc_weight_1"].astype(jnp.bfloat16),                 # (D, H1)
        "w23": jnp.concatenate([params["enc_weight_2"],
                                params["enc_weight_3"]],
                               axis=1).astype(jnp.bfloat16),               # (H1, 2*H2)
        # relu(cat(zi,zj)) @ W_two @ W_three[:H2] == relu(zi)@va + relu(zj)@vb
        "va_row": (w_two[:h2] @ w_three[:h2]).T,                           # (1, H2) f32
        "vb_row": (w_two[h2:] @ w_three[:h2]).T,                           # (1, H2) f32
        "w3b_row": w_three[h2:].T,                                         # (1, H2) f32
    }


def vgae_forward(prep, x, noise, train_edges, train_false_edges,
                 *, row_tile=512, edge_tile=128):
    f32, bf16 = jnp.float32, jnp.bfloat16
    adj = prep["adj"]
    n = adj.shape[0]
    d = x.shape[1]
    h1 = prep["w1"].shape[1]
    h2 = prep["w3b_row"].shape[1]
    tn = _pick_tile(n, row_tile)
    params_common = dict(dimension_semantics=("parallel",), vmem_limit_bytes=_VMEM_CAP)

    # ---------- pass 1: zw = relu((adj @ x) @ W1) @ [W2|W3]  (row-tiled over adj) ----------
    x_bf = x.astype(bf16)
    cost1 = pl.CostEstimate(
        flops=int(2 * (n * n * d + n * d * h1 + n * h1 * 2 * h2)),
        transcendentals=0,
        bytes_accessed=int(2 * (adj.size + x_bf.size + prep["w1"].size
                                + prep["w23"].size + n * 2 * h2)))
    zw = pl.pallas_call(
        _enc1_kernel,
        out_shape=jax.ShapeDtypeStruct((n, 2 * h2), bf16),
        grid=(n // tn,),
        in_specs=[pl.BlockSpec((tn, n), lambda i: (i, 0)),        # adj row tile
                  pl.BlockSpec((n, d), lambda i: (0, 0)),         # x, VMEM-resident
                  pl.BlockSpec((d, h1), lambda i: (0, 0)),        # W1, resident
                  pl.BlockSpec((h1, 2 * h2), lambda i: (0, 0))],  # [W2|W3], resident
        out_specs=pl.BlockSpec((tn, 2 * h2), lambda i: (i, 0)),
        compiler_params=pltpu.CompilerParams(**params_common),
        cost_estimate=cost1,
    )(adj, x_bf, prep["w1"], prep["w23"])

    # ---------- pass 2: zs = noise*exp(logstd)+mean ; zr = [zs | relu(zs)] ----------
    cost2 = pl.CostEstimate(
        flops=int(2 * n * n * 2 * h2 + 6 * n * h2),
        transcendentals=int(n * h2),
        bytes_accessed=int(2 * adj.size + 2 * zw.size + 4 * noise.size + 2 * n * 2 * h2))
    zr = pl.pallas_call(
        _enc2_kernel,
        out_shape=jax.ShapeDtypeStruct((n, 2 * h2), bf16),
        grid=(n // tn,),
        in_specs=[pl.BlockSpec((tn, n), lambda i: (i, 0)),        # adj row tile
                  pl.BlockSpec((n, 2 * h2), lambda i: (0, 0)),    # zw, resident
                  pl.BlockSpec((tn, h2), lambda i: (i, 0))],      # noise row tile (f32)
        out_specs=pl.BlockSpec((tn, 2 * h2), lambda i: (i, 0)),
        compiler_params=pltpu.CompilerParams(**params_common),
        cost_estimate=cost2,
    )(adj, zw, noise)

    # ---------- pass 3: edge-tiled gather + folded decoder ----------
    # decode() is row-independent, so decoding the concatenated edge list equals
    # cat(decode(true), decode(false)).
    edges = jnp.concatenate([train_edges, train_false_edges], axis=0).astype(jnp.int32)
    e = edges.shape[0]
    te = edge_tile
    e_pad = max(te, pl.cdiv(e, te) * te)
    eidx = jnp.pad(edges, ((0, e_pad - e), (0, 0)))   # padded edges -> node 0, sliced off below

    cost3 = pl.CostEstimate(
        flops=int(2 * (2 * e_pad * n * 2 * h2 + 3 * e_pad * h2) + e_pad * h2),
        transcendentals=int(e_pad),
        bytes_accessed=int(4 * eidx.size + 2 * zr.size + 4 * e_pad + 3 * 4 * h2))
    out = pl.pallas_call(
        _dec_kernel,
        out_shape=jax.ShapeDtypeStruct((1, e_pad), jnp.float32),
        grid=(e_pad // te,),
        in_specs=[pl.BlockSpec((te, 2), lambda t: (t, 0)),        # edge-index tile
                  pl.BlockSpec((n, 2 * h2), lambda t: (0, 0)),    # [zs | relu(zs)], resident
                  pl.BlockSpec((1, h2), lambda t: (0, 0)),        # va_row, resident
                  pl.BlockSpec((1, h2), lambda t: (0, 0)),        # vb_row, resident
                  pl.BlockSpec((1, h2), lambda t: (0, 0))],       # w3b_row, resident
        out_specs=pl.BlockSpec((1, te), lambda t: (0, t)),        # lane-dense logit row
        compiler_params=pltpu.CompilerParams(**params_common),
        cost_estimate=cost3,
    )(eidx, zr, prep["va_row"], prep["vb_row"], prep["w3b_row"])

    # wrapper-side layout plumbing: drop padding, present the module's (E, 1) shape.
    return out[0, :e].reshape(e, 1)


# ------------------------- pure-JAX f32 reference ----------------------------

def vgae_reference(params, adj, x, noise, train_edges, train_false_edges):
    t = x @ params["enc_weight_1"]
    z = jnp.maximum(adj @ t, 0.0)
    mean = adj @ (z @ params["enc_weight_2"])
    logstd = adj @ (z @ params["enc_weight_3"])
    zs = noise * jnp.exp(logstd) + mean
    edges = jnp.concatenate([train_edges, train_false_edges], axis=0)
    zi = zs[edges[:, 0]]
    zj = zs[edges[:, 1]]
    pair = jnp.maximum(jnp.concatenate([zi, zj], axis=1), 0.0) @ params["weight_two"]
    logits = jnp.concatenate([pair, zi * zj], axis=1) @ params["weight_three"]
    return jax.nn.sigmoid(logits)


# --------------------------- deterministic init ------------------------------

def glorot_init(input_dim, output_dim, seed):
    init_range = np.sqrt(6.0 / (input_dim + output_dim))
    rng = np.random.RandomState(seed)
    w = rng.rand(input_dim, output_dim) * 2.0 * init_range - init_range
    return jnp.asarray(w, dtype=jnp.float32)


# ---------------------------------- main -------------------------------------

if __name__ == "__main__":
    # Small shapes implied by the module: N nodes, input_dim, output_dim, output_dim2.
    N, D, H1, H2 = 256, 16, 32, 16
    E_TRUE, E_FALSE = 96, 96

    seed = 7
    params = {
        "enc_weight_1": glorot_init(D, H1, seed + 0),
        "enc_weight_2": glorot_init(H1, H2, seed + 1),
        "enc_weight_3": glorot_init(H1, H2, seed + 2),
        "weight_two":   glorot_init(H2 * 2, H2, seed + 3),
        "weight_three": glorot_init(H2 * 2, 1, seed + 4),
    }

    key = jax.random.PRNGKey(0)
    kx, kadj, knoise, ke1, ke2 = jax.random.split(key, 5)

    x = jax.random.normal(kx, (N, D), dtype=jnp.float32)

    # Deterministic symmetric normalized adjacency with self-loops (module's `adj`).
    a = (jax.random.uniform(kadj, (N, N)) > 0.8).astype(jnp.float32)
    a = jnp.maximum(a, a.T) + jnp.eye(N, dtype=jnp.float32)
    deg = jnp.sum(a, axis=1, keepdims=True)
    adj = a / deg

    # gaussian_noise = torch.randn(N, hidden2_dim) — reparameterization noise.
    noise = jax.random.normal(knoise, (N, H2), dtype=jnp.float32)

    train_edges = jax.random.randint(ke1, (E_TRUE, 2), 0, N, dtype=jnp.int32)
    train_false_edges = jax.random.randint(ke2, (E_FALSE, 2), 0, N, dtype=jnp.int32)

    prep = prepare_vgae(params, adj)   # one-time host prep (bf16 casts, W23 concat, folds)

    # row_tile=64 exercises a 4-step pipelined row grid at this toy N; use >=512 at scale.
    fwd = jax.jit(functools.partial(vgae_forward, row_tile=64, edge_tile=128))
    out = fwd(prep, x, noise, train_edges, train_false_edges)
    out = jax.block_until_ready(out)

    ref = vgae_reference(params, adj, x, noise, train_edges, train_false_edges)
    max_err = float(jnp.max(jnp.abs(out - ref)))

    assert out.shape == (E_TRUE + E_FALSE, 1)
    assert bool(jnp.all(jnp.isfinite(out)))
    assert bool(jnp.all((out >= 0.0) & (out <= 1.0)))
    assert max_err < 5e-2, f"max abs error vs f32 reference: {max_err}"
    print("KERNEL_OK")
</pallas_src>

<mosaic_0001>
module attributes {stable_mosaic.version = 11 : i64} {
  func.func @_enc1_kernel(%arg0: i32, %arg1: memref<64x256xbf16, #tpu.memory_space<vmem>>, %arg2: memref<256x16xbf16, #tpu.memory_space<vmem>>, %arg3: memref<16x32xbf16, #tpu.memory_space<vmem>>, %arg4: memref<32x32xbf16, #tpu.memory_space<vmem>>, %arg5: memref<64x32xbf16, #tpu.memory_space<vmem>>) attributes {dimension_semantics = [#tpu.dimension_semantics<parallel>], iteration_bounds = array<i64: 4>, scalar_prefetch = 0 : i64, scratch_operands = 0 : i64, tpu.core_type = #tpu.core_type<tc>, window_params = [{transform_indices = @transform_0, window_bounds = array<i64: 64, 256>}, {pipeline_mode = #tpu.pipeline_mode<synchronous>, transform_indices = @transform_1, window_bounds = array<i64: 256, 16>}, {pipeline_mode = #tpu.pipeline_mode<synchronous>, transform_indices = @transform_2, window_bounds = array<i64: 16, 32>}, {pipeline_mode = #tpu.pipeline_mode<synchronous>, transform_indices = @transform_3, window_bounds = array<i64: 32, 32>}, {transform_indices = @transform_4, window_bounds = array<i64: 64, 32>}]} {
    %c0 = arith.constant 0 : index
    %c0_0 = arith.constant 0 : index
    %0 = vector.load %arg1[%c0, %c0_0] : memref<64x256xbf16, #tpu.memory_space<vmem>>, vector<64x256xbf16>
    %c0_1 = arith.constant 0 : index
    %c0_2 = arith.constant 0 : index
    %1 = vector.load %arg2[%c0_1, %c0_2] : memref<256x16xbf16, #tpu.memory_space<vmem>>, vector<256x16xbf16>
    %cst = arith.constant dense<0.000000e+00> : vector<64x16xf32>
    %2 = tpu.matmul %0, %1, %cst {dimension_numbers = #tpu.dot_dimension_numbers<[1], [0], [0], [1], [0, 0, 1, 1], [], []>} : vector<64x256xbf16>, vector<256x16xbf16>, vector<64x16xf32> -> vector<64x16xf32>
    %3 = arith.truncf %2 : vector<64x16xf32> to vector<64x16xbf16>
    %c0_3 = arith.constant 0 : index
    %c0_4 = arith.constant 0 : index
    %4 = vector.load %arg3[%c0_3, %c0_4] : memref<16x32xbf16, #tpu.memory_space<vmem>>, vector<16x32xbf16>
    %cst_5 = arith.constant dense<0.000000e+00> : vector<64x32xf32>
    %5 = tpu.matmul %3, %4, %cst_5 {dimension_numbers = #tpu.dot_dimension_numbers<[1], [0], [0], [1], [0, 0, 1, 1], [], []>} : vector<64x16xbf16>, vector<16x32xbf16>, vector<64x32xf32> -> vector<64x32xf32>
    %cst_6 = arith.constant 0.000000e+00 : f32
    %6 = vector.broadcast %cst_6 : f32 to vector<64x32xf32>
    %7 = arith.maximumf %5, %6 : vector<64x32xf32>
    %8 = arith.truncf %7 : vector<64x32xf32> to vector<64x32xbf16>
    %c0_7 = arith.constant 0 : index
    %c0_8 = arith.constant 0 : index
    %9 = vector.load %arg4[%c0_7, %c0_8] : memref<32x32xbf16, #tpu.memory_space<vmem>>, vector<32x32xbf16>
    %cst_9 = arith.constant dense<0.000000e+00> : vector<64x32xf32>
    %10 = tpu.matmul %8, %9, %cst_9 {dimension_numbers = #tpu.dot_dimension_numbers<[1], [0], [0], [1], [0, 0, 1, 1], [], []>} : vector<64x32xbf16>, vector<32x32xbf16>, vector<64x32xf32> -> vector<64x32xf32>
    %11 = arith.truncf %10 : vector<64x32xf32> to vector<64x32xbf16>
    %c0_10 = arith.constant 0 : index
    %c0_11 = arith.constant 0 : index
    %12 = vector.load %arg5[%c0_10, %c0_11] : memref<64x32xbf16, #tpu.memory_space<vmem>>, vector<64x32xbf16>
    tpu.vector_store %arg5[%c0_10, %c0_11], %11 {strides = array<i32>} : memref<64x32xbf16, #tpu.memory_space<vmem>>, vector<64x32xbf16>,
    return
  }
  func.func @transform_0(%arg0: i32) -> (i32, i32) {
    %c0_i32 = arith.constant 0 : i32
    %c0_i32_0 = arith.constant 0 : i32
    return %arg0, %c0_i32 : i32, i32
  }
  func.func @transform_1(%arg0: i32) -> (i32, i32) {
    %c0_i32 = arith.constant 0 : i32
    %c0_i32_0 = arith.constant 0 : i32
    %c0_i32_1 = arith.constant 0 : i32
    return %c0_i32, %c0_i32_0 : i32, i32
  }
  func.func @transform_2(%arg0: i32) -> (i32, i32) {
    %c0_i32 = arith.constant 0 : i32
    %c0_i32_0 = arith.constant 0 : i32
    %c0_i32_1 = arith.constant 0 : i32
    return %c0_i32, %c0_i32_0 : i32, i32
  }
  func.func @transform_3(%arg0: i32) -> (i32, i32) {
    %c0_i32 = arith.constant 0 : i32
    %c0_i32_0 = arith.constant 0 : i32
    %c0_i32_1 = arith.constant 0 : i32
    return %c0_i32, %c0_i32_0 : i32, i32
  }
  func.func @transform_4(%arg0: i32) -> (i32, i32) {
    %c0_i32 = arith.constant 0 : i32
    %c0_i32_0 = arith.constant 0 : i32
    return %arg0, %c0_i32 : i32, i32
  }
}

module attributes {stable_mosaic.version = 11 : i64} {
  func.func @_dec_kernel(%arg0: i32, %arg1: memref<128x2xi32, #tpu.memory_space<vmem>>, %arg2: memref<256x32xbf16, #tpu.memory_space<vmem>>, %arg3: memref<1x16xf32, #tpu.memory_space<vmem>>, %arg4: memref<1x16xf32, #tpu.memory_space<vmem>>, %arg5: memref<1x16xf32, #tpu.memory_space<vmem>>, %arg6: memref<1x128xf32, #tpu.memory_space<vmem>>) attributes {dimension_semantics = [#tpu.dimension_semantics<parallel>], iteration_bounds = array<i64: 2>, scalar_prefetch = 0 : i64, scratch_operands = 0 : i64, tpu.core_type = #tpu.core_type<tc>, window_params = [{transform_indices = @transform_0, window_bounds = array<i64: 128, 2>}, {pipeline_mode = #tpu.pipeline_mode<synchronous>, transform_indices = @transform_1, window_bounds = array<i64: 256, 32>}, {pipeline_mode = #tpu.pipeline_mode<synchronous>, transform_indices = @transform_2, window_bounds = array<i64: 1, 16>}, {pipeline_mode = #tpu.pipeline_mode<synchronous>, transform_indices = @transform_3, window_bounds = array<i64: 1, 16>}, {pipeline_mode = #tpu.pipeline_mode<synchronous>, transform_indices = @transform_4, window_bounds = array<i64: 1, 16>}, {transform_indices = @transform_5, window_bounds = array<i64: 1, 128>}]} {
    %c0 = arith.constant 0 : index
    %c0_0 = arith.constant 0 : index
    %0 = vector.load %arg1[%c0, %c0_0] : memref<128x2xi32, #tpu.memory_space<vmem>>, vector<128x1xi32>
    %c0_1 = arith.constant 0 : index
    %c1 = arith.constant 1 : index
    %1 = vector.load %arg1[%c0_1, %c1] : memref<128x2xi32, #tpu.memory_space<vmem>>, vector<128x1xi32>
    %2 = tpu.concatenate %0, %1 in 0 : vector<128x1xi32>, vector<128x1xi32> -> vector<256x1xi32>
    %3 = tpu.iota {dimensions = array<i32: 1>} : vector<256x256xi32>
    %4 = vector.broadcast %2 : vector<256x1xi32> to vector<256x256xi32>
    %5 = arith.cmpi eq, %3, %4 : vector<256x256xi32>
    %6 = arith.extui %5 : vector<256x256xi1> to vector<256x256xi32>
    %7 = arith.sitofp %6 : vector<256x256xi32> to vector<256x256xf32>
    %8 = arith.truncf %7 : vector<256x256xf32> to vector<256x256xbf16>
    %c0_2 = arith.constant 0 : index
    %c0_3 = arith.constant 0 : index
    %9 = vector.load %arg2[%c0_2, %c0_3] : memref<256x32xbf16, #tpu.memory_space<vmem>>, vector<256x32xbf16>
    %cst = arith.constant dense<0.000000e+00> : vector<256x32xf32>
    %10 = tpu.matmul %8, %9, %cst {dimension_numbers = #tpu.dot_dimension_numbers<[1], [0], [0], [1], [0, 0, 1, 1], [], []>} : vector<256x256xbf16>, vector<256x32xbf16>, vector<256x32xf32> -> vector<256x32xf32>
    %11 = vector.extract_strided_slice %10 {offsets = [0, 0], sizes = [128, 32], strides = [1, 1]} : vector<256x32xf32> to vector<128x32xf32>
    %12 = vector.extract_strided_slice %10 {offsets = [128, 0], sizes = [128, 32], strides = [1, 1]} : vector<256x32xf32> to vector<128x32xf32>
    %13 = vector.extract_strided_slice %11 {offsets = [0, 0], sizes = [128, 16], strides = [1, 1]} : vector<128x32xf32> to vector<128x16xf32>
    %14 = vector.extract_strided_slice %11 {offsets = [0, 16], sizes = [128, 16], strides = [1, 1]} : vector<128x32xf32> to vector<128x16xf32>
    %15 = vector.extract_strided_slice %12 {offsets = [0, 0], sizes = [128, 16], strides = [1, 1]} : vector<128x32xf32> to vector<128x16xf32>
    %16 = vector.extract_strided_slice %12 {offsets = [0, 16], sizes = [128, 16], strides = [1, 1]} : vector<128x32xf32> to vector<128x16xf32>
    %c0_4 = arith.constant 0 : index
    %c0_5 = arith.constant 0 : index
    %17 = vector.load %arg5[%c0_4, %c0_5] : memref<1x16xf32, #tpu.memory_space<vmem>>, vector<1x16xf32>
    %18 = arith.mulf %13, %15 : vector<128x16xf32>
    %cst_6 = arith.constant dense<0.000000e+00> : vector<1x128xf32>
    %19 = tpu.matmul %17, %18, %cst_6 {dimension_numbers = #tpu.dot_dimension_numbers<[1], [1], [0], [0], [0, 0, 1, 0], [], []>} : vector<1x16xf32>, vector<128x16xf32>, vector<1x128xf32> -> vector<1x128xf32>
    %c0_7 = arith.constant 0 : index
    %c0_8 = arith.constant 0 : index
    %20 = vector.load %arg3[%c0_7, %c0_8] : memref<1x16xf32, #tpu.memory_space<vmem>>, vector<1x16xf32>
    %cst_9 = arith.constant dense<0.000000e+00> : vector<1x128xf32>
    %21 = tpu.matmul %20, %14, %cst_9 {dimension_numbers = #tpu.dot_dimension_numbers<[1], [1], [0], [0], [0, 0, 1, 0], [], []>} : vector<1x16xf32>, vector<128x16xf32>, vector<1x128xf32> -> vector<1x128xf32>
    %22 = arith.addf %19, %21 : vector<1x128xf32>
    %c0_10 = arith.constant 0 : index
    %c0_11 = arith.constant 0 : index
    %23 = vector.load %arg4[%c0_10, %c0_11] : memref<1x16xf32, #tpu.memory_space<vmem>>, vector<1x16xf32>
    %cst_12 = arith.constant dense<0.000000e+00> : vector<1x128xf32>
    %24 = tpu.matmul %23, %16, %cst_12 {dimension_numbers = #tpu.dot_dimension_numbers<[1], [1], [0], [0], [0, 0, 1, 0], [], []>} : vector<1x16xf32>, vector<128x16xf32>, vector<1x128xf32> -> vector<1x128xf32>
    %25 = arith.addf %22, %24 : vector<1x128xf32>
    %26 = arith.negf %25 : vector<1x128xf32>
    %27 = math.exp %26 : vector<1x128xf32>
    %cst_13 = arith.constant 1.000000e+00 : f32
    %28 = vector.broadcast %cst_13 : f32 to vector<1x128xf32>
    %29 = arith.addf %28, %27 : vector<1x128xf32>
    %30 = arith.divf %28, %29 : vector<1x128xf32>
    %c0_14 = arith.constant 0 : index
    %c0_15 = arith.constant 0 : index
    %31 = vector.load %arg6[%c0_14, %c0_15] : memref<1x128xf32, #tpu.memory_space<vmem>>, vector<1x128xf32>
    tpu.vector_store %arg6[%c0_14, %c0_15], %30 {strides = array<i32>} : memref<1x128xf32, #tpu.memory_space<vmem>>, vector<1x128xf32>,
    return
  }
  func.func @transform_0(%arg0: i32) -> (i32, i32) {
    %c0_i32 = arith.constant 0 : i32
    %c0_i32_0 = arith.constant 0 : i32
    return %arg0, %c0_i32 : i32, i32
  }
  func.func @transform_1(%arg0: i32) -> (i32, i32) {
    %c0_i32 = arith.constant 0 : i32
    %c0_i32_0 = arith.constant 0 : i32
    %c0_i32_1 = arith.constant 0 : i32
    return %c0_i32, %c0_i32_0 : i32, i32
  }
  func.func @transform_2(%arg0: i32) -> (i32, i32) {
    %c0_i32 = arith.constant 0 : i32
    %c0_i32_0 = arith.constant 0 : i32
    %c0_i32_1 = arith.constant 0 : i32
    return %c0_i32, %c0_i32_0 : i32, i32
  }
  func.func @transform_3(%arg0: i32) -> (i32, i32) {
    %c0_i32 = arith.constant 0 : i32
    %c0_i32_0 = arith.constant 0 : i32
    %c0_i32_1 = arith.constant 0 : i32
    return %c0_i32, %c0_i32_0 : i32, i32
  }
  func.func @transform_4(%arg0: i32) -> (i32, i32) {
    %c0_i32 = arith.constant 0 : i32
    %c0_i32_0 = arith.constant 0 : i32
    %c0_i32_1 = arith.constant 0 : i32
    return %c0_i32, %c0_i32_0 : i32, i32
  }
  func.func @transform_5(%arg0: i32) -> (i32, i32) {
    %c0_i32 = arith.constant 0 : i32
    %c0_i32_0 = arith.constant 0 : i32
    return %c0_i32, %arg0 : i32, i32
  }
}

module attributes {stable_mosaic.version = 11 : i64} {
  func.func @_enc2_kernel(%arg0: i32, %arg1: memref<64x256xbf16, #tpu.memory_space<vmem>>, %arg2: memref<256x32xbf16, #tpu.memory_space<vmem>>, %arg3: memref<64x16xf32, #tpu.memory_space<vmem>>, %arg4: memref<64x32xbf16, #tpu.memory_space<vmem>>) attributes {dimension_semantics = [#tpu.dimension_semantics<parallel>], iteration_bounds = array<i64: 4>, scalar_prefetch = 0 : i64, scratch_operands = 0 : i64, tpu.core_type = #tpu.core_type<tc>, window_params = [{transform_indices = @transform_0, window_bounds = array<i64: 64, 256>}, {pipeline_mode = #tpu.pipeline_mode<synchronous>, transform_indices = @transform_1, window_bounds = array<i64: 256, 32>}, {transform_indices = @transform_2, window_bounds = array<i64: 64, 16>}, {transform_indices = @transform_3, window_bounds = array<i64: 64, 32>}]} {
    %c0 = arith.constant 0 : index
    %c0_0 = arith.constant 0 : index
    %0 = vector.load %arg1[%c0, %c0_0] : memref<64x256xbf16, #tpu.memory_space<vmem>>, vector<64x256xbf16>
    %c0_1 = arith.constant 0 : index
    %c0_2 = arith.constant 0 : index
    %1 = vector.load %arg2[%c0_1, %c0_2] : memref<256x32xbf16, #tpu.memory_space<vmem>>, vector<256x32xbf16>
    %cst = arith.constant dense<0.000000e+00> : vector<64x32xf32>
    %2 = tpu.matmul %0, %1, %cst {dimension_numbers = #tpu.dot_dimension_numbers<[1], [0], [0], [1], [0, 0, 1, 1], [], []>} : vector<64x256xbf16>, vector<256x32xbf16>, vector<64x32xf32> -> vector<64x32xf32>
    %3 = vector.extract_strided_slice %2 {offsets = [0, 0], sizes = [64, 16], strides = [1, 1]} : vector<64x32xf32> to vector<64x16xf32>
    %4 = vector.extract_strided_slice %2 {offsets = [0, 16], sizes = [64, 16], strides = [1, 1]} : vector<64x32xf32> to vector<64x16xf32>
    %c0_3 = arith.constant 0 : index
    %c0_4 = arith.constant 0 : index
    %5 = vector.load %arg3[%c0_3, %c0_4] : memref<64x16xf32, #tpu.memory_space<vmem>>, vector<64x16xf32>
    %6 = math.exp %4 : vector<64x16xf32>
    %7 = arith.mulf %5, %6 : vector<64x16xf32>
    %8 = arith.addf %7, %3 : vector<64x16xf32>
    %cst_5 = arith.constant 0.000000e+00 : f32
    %9 = vector.broadcast %cst_5 : f32 to vector<64x16xf32>
    %10 = arith.maximumf %8, %9 : vector<64x16xf32>
    %11 = tpu.concatenate %8, %10 in 1 : vector<64x16xf32>, vector<64x16xf32> -> vector<64x32xf32>
    %12 = arith.truncf %11 : vector<64x32xf32> to vector<64x32xbf16>
    %c0_6 = arith.constant 0 : index
    %c0_7 = arith.constant 0 : index
    %13 = vector.load %arg4[%c0_6, %c0_7] : memref<64x32xbf16, #tpu.memory_space<vmem>>, vector<64x32xbf16>
    tpu.vector_store %arg4[%c0_6, %c0_7], %12 {strides = array<i32>} : memref<64x32xbf16, #tpu.memory_space<vmem>>, vector<64x32xbf16>,
    return
  }
  func.func @transform_0(%arg0: i32) -> (i32, i32) {
    %c0_i32 = arith.constant 0 : i32
    %c0_i32_0 = arith.constant 0 : i32
    return %arg0, %c0_i32 : i32, i32
  }
  func.func @transform_1(%arg0: i32) -> (i32, i32) {
    %c0_i32 = arith.constant 0 : i32
    %c0_i32_0 = arith.constant 0 : i32
    %c0_i32_1 = arith.constant 0 : i32
    return %c0_i32, %c0_i32_0 : i32, i32
  }
  func.func @transform_2(%arg0: i32) -> (i32, i32) {
    %c0_i32 = arith.constant 0 : i32
    %c0_i32_0 = arith.constant 0 : i32
    return %arg0, %c0_i32 : i32, i32
  }
  func.func @transform_3(%arg0: i32) -> (i32, i32) {
    %c0_i32 = arith.constant 0 : i32
    %c0_i32_0 = arith.constant 0 : i32
    return %arg0, %c0_i32 : i32, i32
  }
}

</mosaic_0001>

<llo_original>
// kernel: vgae_forward.4
$region0: #{vgae_forward.4}
  #allocation0 [shape = 'u32[]', space=smem, size = 0x4, offset = 0x4, fixed_abs, tag = 'smem constant byte address 0x4 - core index']
  #allocation1 [shape = 'u32[144,128]{1,0:T(1,128)}', space=vmem, size = 0x12000, scoped, tag = 'internal scratch']
  %s0 = inlined_call_operand.vmem [shape: bf16[256,256], index: 0, kind: input, shape index: {}]
  %s1 = inlined_call_operand.vmem [shape: bf16[256,32], index: 1, kind: input, shape index: {}]
  %s2 = inlined_call_operand.vmem [shape: f32[256,16], index: 2, kind: input, shape index: {}]
  %s3 = inlined_call_operand.vmem [shape: bf16[256,32], index: 3, kind: output, shape index: {}]
  %s4 = sld [smem:[#allocation0]]
  $region45: #{vgae_forward.4} parent=0
    _
  %s6 = ssub.s32 1, %s4
  %s7 = scalar_select 0, %s6, %s4
  loop: start=0, step=1, limit=6
  $region2: #{vgae_forward.4} parent=0 // loop_pre_header
    _
  $region3: #{vgae_forward.4} parent=0 // loop_header
    %s9 = sphi 0, %s13
    %p10 = scmp.ge.s32.totalorder %s9, 6
    %s19 = sphi 0, %s21
    %s22 = sphi 0, %s19
    %s23 = sphi 0, %s22
    %s39 = sphi 0, %s23
    %s43 = sphi 0, %s43
    %s45 = sphi 0, %s43
    %s46 = sphi 0, %s45
    %s60 = sphi 0, %s46
    %s66 = sphi 0, %s68
    %s69 = sphi 0, %s66
    %s70 = sphi 0, %s69
    %s86 = sphi 0, %s70
    %s92 = sphi 0, %s94
    %s95 = sphi 0, %s92
    %s96 = sphi 0, %s95
    %s112 = sphi 0, %s96
  $region4: #{vgae_forward.4} parent=0 // loop_header_branch
    %12 = sbr.rel (%p10) target = $region8
  $region5: #{vgae_forward.4} parent=0 // loop_body
    %s14 = ssub.s32 %s9, 1
    %s15 = ssub.s32 %s9, 2
    %s16 = sadd.s32 %s9, 1
    %s17 = ssub.s32 %s9, %s16
    %p18 = scmp.eq.s32.totalorder %s17, 0
    %s20 = sadd.s32 %s19, 1
    %s21 = scalar_select %p18, %s19, %s20
    %p24 = pneg %p18
    %p25 = scmp.eq.s32.totalorder %s9, 3
    %p26 = por %p24, %p25
    %p27 = scmp.ne.s32.totalorder %s19, %s22
    %p28 = scmp.eq.s32.totalorder %s9, 0
    %p29 = por %p27, %p28
    %p30 = scmp.ne.s32.totalorder %s19, %s22
    %p31 = scmp.eq.s32.totalorder %s14, 3
    %p32 = por %p30, %p31
    %p33 = scmp.ne.s32.totalorder %s22, %s23
    %p34 = scmp.eq.s32.totalorder %s14, 0
    %p35 = por %p33, %p34
    %p36 = scmp.ne.s32.totalorder %s22, %s23
    %p37 = scmp.eq.s32.totalorder %s15, 3
    %p38 = por %p36, %p37
    %p40 = scmp.ne.s32.totalorder %s23, %s39
    %p41 = scmp.eq.s32.totalorder %s15, 0
    %p42 = por %p40, %p41
    %s44 = sadd.s32 %s43, 1
    %p47 = scmp.eq.s32.totalorder %s9, 3
    %p48 = scmp.ne.s32.totalorder %s43, %s45
    %p49 = scmp.eq.s32.totalorder %s9, 0
    %p50 = por %p48, %p49
    %p51 = scmp.ne.s32.totalorder %s43, %s45
    %p52 = scmp.eq.s32.totalorder %s14, 3
    %p53 = por %p51, %p52
    %p54 = scmp.ne.s32.totalorder %s45, %s46
    %p55 = scmp.eq.s32.totalorder %s14, 0
    %p56 = por %p54, %p55
    %p57 = scmp.ne.s32.totalorder %s45, %s46
    %p58 = scmp.eq.s32.totalorder %s15, 3
    %p59 = por %p57, %p58
    %p61 = scmp.ne.s32.totalorder %s46, %s60
    %p62 = scmp.eq.s32.totalorder %s15, 0
    %p63 = por %p61, %p62
    %s64 = ssub.s32 %s9, %s16
    %p65 = scmp.eq.s32.totalorder %s64, 0
    %s67 = sadd.s32 %s66, 1
    %s68 = scalar_select %p65, %s66, %s67
    %p71 = pneg %p65
    %p72 = scmp.eq.s32.totalorder %s9, 3
    %p73 = por %p71, %p72
    %p74 = scmp.ne.s32.totalorder %s66, %s69
    %p75 = scmp.eq.s32.totalorder %s9, 0
    %p76 = por %p74, %p75
    %p77 = scmp.ne.s32.totalorder %s66, %s69
    %p78 = scmp.eq.s32.totalorder %s14, 3
    %p79 = por %p77, %p78
    %p80 = scmp.ne.s32.totalorder %s69, %s70
    %p81 = scmp.eq.s32.totalorder %s14, 0
    %p82 = por %p80, %p81
    %p83 = scmp.ne.s32.totalorder %s69, %s70
    %p84 = scmp.eq.s32.totalorder %s15, 3
    %p85 = por %p83, %p84
    %p87 = scmp.ne.s32.totalorder %s70, %s86
    %p88 = scmp.eq.s32.totalorder %s15, 0
    %p89 = por %p87, %p88
    %s90 = ssub.s32 %s9, %s16
    %p91 = scmp.eq.s32.totalorder %s90, 0
    %s93 = sadd.s32 %s92, 1
    %s94 = scalar_select %p91, %s92, %s93
    %p97 = pneg %p91
    %p98 = scmp.eq.s32.totalorder %s9, 3
    %p99 = por %p97, %p98
    %p100 = scmp.ne.s32.totalorder %s92, %s95
    %p101 = scmp.eq.s32.totalorder %s9, 0
    %p102 = por %p100, %p101
    %p103 = scmp.ne.s32.totalorder %s92, %s95
    %p104 = scmp.eq.s32.totalorder %s14, 3
    %p105 = por %p103, %p104
    %p106 = scmp.ne.s32.totalorder %s95, %s96
    %p107 = scmp.eq.s32.totalorder %s14, 0
    %p108 = por %p106, %p107
    %p109 = scmp.ne.s32.totalorder %s95, %s96
    %p110 = scmp.eq.s32.totalorder %s15, 3
    %p111 = por %p109, %p110
    %p113 = scmp.ne.s32.totalorder %s96, %s112
    %p114 = scmp.eq.s32.totalorder %s15, 0
    %p115 = por %p113, %p114
    %p116 = scmp.le.s32.totalorder 1, %s9
    %p117 = scmp.lt.s32.totalorder %s9, 5
    %p118 = pnand %p116, %p117
    %p119 = pneg %p118
    // Predicated region
    $region9: #{vgae_forward.4} parent=5 // pred_check
      _
    $region10: #{vgae_forward.4} parent=5 // pred_check_branch
      %121 = sbr.rel (%p118) target = $region12
    $region11: #{vgae_forward.4} parent=5 // pred_region
      %s122 = ssub.s32 %s9, 1
      // Predicated region
      $region13: #{vgae_forward.4} parent=11 // pred_check
        %p123 = pneg %p56
      $region14: #{vgae_forward.4} parent=11 // pred_check_branch
        %125 = sbr.rel (%p123) target = $region16
      $region15: #{vgae_forward.4} parent=11 // pred_region
        _
      $region16: #{vgae_forward.4} parent=11 // pred_fallthru
        _
    $region12: #{vgae_forward.4} parent=5 // pred_fallthru
      _
    %p126 = scmp.lt.s32.totalorder %s9, 4
    // Predicated region
    $region17: #{vgae_forward.4} parent=5 // pred_check
      %p127 = pneg %p126
    $region18: #{vgae_forward.4} parent=5 // pred_check_branch
      %129 = sbr.rel (%p127) target = $region20
    $region19: #{vgae_forward.4} parent=5 // pred_region
      // Predicated region
      $region21: #{vgae_forward.4} parent=19 // pred_check
        %p130 = pneg %p29
      $region22: #{vgae_forward.4} parent=19 // pred_check_branch
        %132 = sbr.rel (%p130) target = $region24
      $region23: #{vgae_forward.4} parent=19 // pred_region
        %s133 = smul.u32 8, %s9
        %p134 = scmp.lt.s32.totalorder %s133, 31
        %s135 = scalar_select %p134, %s133, 31
        %s136 = smul.addr %s135, 2
        %s137 = smul.addr %s136, 4
        %s138 = scalar_lea.vmem %s0, %s137
        %s139 = smul.u32 8, %s9
      $region24: #{vgae_forward.4} parent=19 // pred_fallthru
        _
      // Predicated region
      $region25: #{vgae_forward.4} parent=19 // pred_check
        %p140 = pneg %p76
      $region26: #{vgae_forward.4} parent=19 // pred_check_branch
        %142 = sbr.rel (%p140) target = $region28
      $region27: #{vgae_forward.4} parent=19 // pred_region
        %s143 = smul.u32 8, %s9
        %p144 = scmp.lt.s32.totalorder %s143, 31
        %s145 = scalar_select %p144, %s143, 31
        %s146 = smul.addr %s145, 8
        %s147 = scalar_lea.vmem %s2, %s146
        %s148 = smul.u32 8, %s9
      $region28: #{vgae_forward.4} parent=19 // pred_fallthru
        _
    $region20: #{vgae_forward.4} parent=5 // pred_fallthru
      _
    %p149 = scmp.le.s32.totalorder 1, %s9
    %p150 = scmp.lt.s32.totalorder %s9, 5
    %p151 = pnand %p149, %p150
    %p152 = pneg %p151
    // Predicated region
    $region29: #{vgae_forward.4} parent=5 // pred_check
      _
    $region30: #{vgae_forward.4} parent=5 // pred_check_branch
      %154 = sbr.rel (%p151) target = $region32
    $region31: #{vgae_forward.4} parent=5 // pred_region
      %s155 = ssub.s32 %s9, 1
      %s156 = smul.u32 8, %s14
      %p157 = scmp.lt.s32.totalorder %s156, 31
      %s158 = scalar_select %p157, %s156, 31
      %s159 = smul.addr %s158, 2
      %s160 = smul.addr %s159, 4
      %s161 = scalar_lea.vmem %s0, %s160
      %p162 = pneg %p35
      %p163 = pneg %p32
      %p164 = pneg %p56
      %p165 = pneg %p53
      %s166 = smul.u32 8, %s14
      %p167 = scmp.lt.s32.totalorder %s166, 31
      %s168 = scalar_select %p167, %s166, 31
      %s169 = smul.addr %s168, 8
      %s170 = scalar_lea.vmem %s2, %s169
      %p171 = pneg %p82
      %p172 = pneg %p79
      %p173 = pneg %p108
      %p174 = pneg %p105
      %s175 = smul.u32 8, %s14
      %p176 = scmp.lt.s32.totalorder %s175, 31
      %s177 = scalar_select %p176, %s175, 31
      %s178 = smul.addr %s177, 4
      %s179 = scalar_lea.vmem %s3, %s178
      %s180 = smul.u32 8, %s14
      %p181 = scmp.lt.s32.totalorder %s180, 31
      %s182 = scalar_select %p181, %s180, 31
      %s183 = smul.addr %s182, 2
      %s184 = smul.addr %s183, 4
      %s185 = scalar_lea.vmem %s0, %s184
      %s186 = smul.u32 8, %s14
      %s187 = smul.u32 8, %s14
      %p188 = scmp.lt.s32.totalorder %s187, 31
      %s189 = scalar_select %p188, %s187, 31
      %s190 = smul.addr %s189, 8
      %s191 = scalar_lea.vmem %s2, %s190
      %s192 = smul.u32 8, %s14
      %s193 = smul.u32 8, %s14
      %p194 = scmp.lt.s32.totalorder %s193, 31
      %s195 = scalar_select %p194, %s193, 31
      %s196 = smul.addr %s195, 4
      %s197 = scalar_lea.vmem %s3, %s196
      %s198 = smul.u32 8, %s14
      %v200 = vld [vmem:[%s185] sm:$0xff]
      %v201 = vld [vmem:[%s185 + $0x8] sm:$0xff]
      %v202 = vld [vmem:[%s185 + $0x10] sm:$0xff]
      %v203 = vld [vmem:[%s185 + $0x18] sm:$0xff]
      %v204 = vld [vmem:[%s185 + $0x20] sm:$0xff]
      %v205 = vld [vmem:[%s185 + $0x28] sm:$0xff]
      %v206 = vld [vmem:[%s185 + $0x30] sm:$0xff]
      %v207 = vld [vmem:[%s185 + $0x38] sm:$0xff]
      %v208 = vld [vmem:[%s1] sm:$0xf]
      %v209 = vld [vmem:[%s1 + $0x4] sm:$0xf]
      %v210 = vld [vmem:[%s1 + $0x8] sm:$0xf]
      %v211 = vld [vmem:[%s1 + $0xc] sm:$0xf]
      %v212 = vld [vmem:[%s1 + $0x10] sm:$0xf]
      %v213 = vld [vmem:[%s1 + $0x14] sm:$0xf]
      %v214 = vld [vmem:[%s1 + $0x18] sm:$0xf]
      %v215 = vld [vmem:[%s1 + $0x1c] sm:$0xf]
      %v216 = vld [vmem:[%s1 + $0x20] sm:$0xf]
      %v217 = vld [vmem:[%s1 + $0x24] sm:$0xf]
      %v218 = vld [vmem:[%s1 + $0x28] sm:$0xf]
      %v219 = vld [vmem:[%s1 + $0x2c] sm:$0xf]
      %v220 = vld [vmem:[%s1 + $0x30] sm:$0xf]
      %v221 = vld [vmem:[%s1 + $0x34] sm:$0xf]
      %v222 = vld [vmem:[%s1 + $0x38] sm:$0xf]
      %v223 = vld [vmem:[%s1 + $0x3c] sm:$0xf]
      %v224 = vld [vmem:[%s1 + $0x40] sm:$0xf]
      %v225 = vld [vmem:[%s1 + $0x44] sm:$0xf]
      %v226 = vld [vmem:[%s1 + $0x48] sm:$0xf]
      %v227 = vld [vmem:[%s1 + $0x4c] sm:$0xf]
      %v228 = vld [vmem:[%s1 + $0x50] sm:$0xf]
      %v229 = vld [vmem:[%s1 + $0x54] sm:$0xf]
      %v230 = vld [vmem:[%s1 + $0x58] sm:$0xf]
      %v231 = vld [vmem:[%s1 + $0x5c] sm:$0xf]
      %v232 = vld [vmem:[%s1 + $0x60] sm:$0xf]
      %v233 = vld [vmem:[%s1 + $0x64] sm:$0xf]
      %v234 = vld [vmem:[%s1 + $0x68] sm:$0xf]
      %v235 = vld [vmem:[%s1 + $0x6c] sm:$0xf]
      %v236 = vld [vmem:[%s1 + $0x70] sm:$0xf]
      %v237 = vld [vmem:[%s1 + $0x74] sm:$0xf]
      %v238 = vld [vmem:[%s1 + $0x78] sm:$0xf]
      %v239 = vld [vmem:[%s1 + $0x7c] sm:$0xf]
      %v248 = vunpack.c.l.b16 %v200
      %v249 = vunpack.c.h.b16 %v200
      %v250 = vunpack.c.l.b16 %v201
      %v251 = vunpack.c.h.b16 %v201
      %v252 = vunpack.c.l.b16 %v202
      %v253 = vunpack.c.h.b16 %v202
      %v254 = vunpack.c.l.b16 %v203
      %v255 = vunpack.c.h.b16 %v203
      %v256 = vunpack.c.l.b16 %v204
      %v257 = vunpack.c.h.b16 %v204
      %v258 = vunpack.c.l.b16 %v205
      %v259 = vunpack.c.h.b16 %v205
      %v260 = vunpack.c.l.b16 %v206
      %v261 = vunpack.c.h.b16 %v206
      %v262 = vunpack.c.l.b16 %v207
      %v263 = vunpack.c.h.b16 %v207
      %v264 = vpack.c.b16 %v250, %v248
      %v265 = vpack.c.b16 %v251, %v249
      %v266 = vpack.c.b16 %v254, %v252
      %v267 = vpack.c.b16 %v255, %v253
      %v268 = vpack.c.b16 %v258, %v256
      %v269 = vpack.c.b16 %v259, %v257
      %v270 = vpack.c.b16 %v262, %v260
      %v271 = vpack.c.b16 %v263, %v261
      %v312 = vunpack.c.l.b16 %v208
      %v313 = vunpack.c.l.b16 %v209
      %v314 = vunpack.c.l.b16 %v210
      %v315 = vunpack.c.l.b16 %v211
      %v316 = vunpack.c.l.b16 %v212
      %v317 = vunpack.c.l.b16 %v213
      %v318 = vunpack.c.l.b16 %v214
      %v319 = vunpack.c.l.b16 %v215
      %v320 = vunpack.c.l.b16 %v216
      %v321 = vunpack.c.l.b16 %v217
      %v322 = vunpack.c.l.b16 %v218
      %v323 = vunpack.c.l.b16 %v219
      %v324 = vunpack.c.l.b16 %v220
      %v325 = vunpack.c.l.b16 %v221
      %v326 = vunpack.c.l.b16 %v222
      %v327 = vunpack.c.l.b16 %v223
      %v328 = vunpack.c.l.b16 %v224
      %v329 = vunpack.c.l.b16 %v225
      %v330 = vunpack.c.l.b16 %v226
      %v331 = vunpack.c.l.b16 %v227
      %v332 = vunpack.c.l.b16 %v228
      %v333 = vunpack.c.l.b16 %v229
      %v334 = vunpack.c.l.b16 %v230
      %v335 = vunpack.c.l.b16 %v231
      %v336 = vunpack.c.l.b16 %v232
      %v337 = vunpack.c.l.b16 %v233
      %v338 = vunpack.c.l.b16 %v234
      %v339 = vunpack.c.l.b16 %v235
      %v340 = vunpack.c.l.b16 %v236
      %v341 = vunpack.c.l.b16 %v237
      %v342 = vunpack.c.l.b16 %v238
      %v343 = vunpack.c.l.b16 %v239
      %v344 = vpack.c.b16 %v313, %v312
      %v345 = vpack.c.b16 %v315, %v314
      %v346 = vpack.c.b16 %v317, %v316
      %v347 = vpack.c.b16 %v319, %v318
      %v348 = vpack.c.b16 %v321, %v320
      %v349 = vpack.c.b16 %v323, %v322
      %v350 = vpack.c.b16 %v325, %v324
      %v351 = vpack.c.b16 %v327, %v326
      %v352 = vpack.c.b16 %v329, %v328
      %v353 = vpack.c.b16 %v331, %v330
      %v354 = vpack.c.b16 %v333, %v332
      %v355 = vpack.c.b16 %v335, %v334
      %v356 = vpack.c.b16 %v337, %v336
      %v357 = vpack.c.b16 %v339, %v338
      %v358 = vpack.c.b16 %v341, %v340
      %v359 = vpack.c.b16 %v343, %v342
      %376 = vmatprep.subr.bf16.mxu0 0
      %377 = vmatpush1.bf16.msra.mxu0 %v344
      %378 = vmatprep.subr.bf16.mxu0 0
      %379 = vmatpush1.bf16.msra.mxu0 %v345
      %380 = vmatprep.subr.bf16.mxu0 0
      %381 = vmatpush1.bf16.msra.mxu0 %v346
      %382 = vmatprep.subr.bf16.mxu0 0
      %383 = vmatpush1.bf16.msra.mxu0 %v347
      %384 = vmatprep.subr.bf16.mxu0 0
      %385 = vmatpush1.bf16.msra.mxu0 %v348
      %386 = vmatprep.subr.bf16.mxu0 0
      %387 = vmatpush1.bf16.msra.mxu0 %v349
      %388 = vmatprep.subr.bf16.mxu0 0
      %389 = vmatpush1.bf16.msra.mxu0 %v350
      %390 = vmatprep.subr.bf16.mxu0 0
      %391 = vmatpush1.bf16.msra.mxu0 %v351
      %392 = vmatprep.subr.bf16.mxu0 0
      %393 = vmatpush1.bf16.msra.mxu0 %v352
      %394 = vmatprep.subr.bf16.mxu0 0
      %395 = vmatpush1.bf16.msra.mxu0 %v353
      %396 = vmatprep.subr.bf16.mxu0 0
      %397 = vmatpush1.bf16.msra.mxu0 %v354
      %398 = vmatprep.subr.bf16.mxu0 0
      %399 = vmatpush1.bf16.msra.mxu0 %v355
      %400 = vmatprep.subr.bf16.mxu0 0
      %401 = vmatpush1.bf16.msra.mxu0 %v356
      %402 = vmatprep.subr.bf16.mxu0 0
      %403 = vmatpush1.bf16.msra.mxu0 %v357
      %404 = vmatprep.subr.bf16.mxu0 0
      %405 = vmatpush1.bf16.msra.mxu0 %v358
      %406 = vmatprep.subr.bf16.mxu0 0
      %407 = vmatpush1.bf16.msra.mxu0 %v359
      %408 = vmatprep.mubr.bf16.mxu0 %v265
      %409 = vmatmul.mubr.bf16.gmra.mrb[0].mxu0 %v264
      %v410 = vpop.f32.mrb[0].mxu0
      %v411 = vadd.f32 0.0, %v410
      %v412 = vpop.f32.mrb[0].mxu0
      %v413 = vpop.f32.mrb[0].mxu0
      %v414 = vadd.f32 0.0, %v413
      %v415 = vpop.f32.mrb[0].mxu0
      %416 = vmatprep.mubr.bf16.mxu0 %v267
      %417 = vmatmul.mubr.bf16.gmra.mrb[0].mxu0 %v266
      %v418 = vpop.f32.mrb[0].mxu0
      %v419 = vadd.f32 0.0, %v418
      %v420 = vpop.f32.mrb[0].mxu0
      %v421 = vpop.f32.mrb[0].mxu0
      %v422 = vadd.f32 0.0, %v421
      %v423 = vpop.f32.mrb[0].mxu0
      %424 = vmatprep.mubr.bf16.mxu0 %v269
      %425 = vmatmul.mubr.bf16.gmra.mrb[0].mxu0 %v268
      %v426 = vpop.f32.mrb[0].mxu0
      %v427 = vadd.f32 0.0, %v426
      %v428 = vpop.f32.mrb[0].mxu0
      %v429 = vpop.f32.mrb[0].mxu0
      %v430 = vadd.f32 0.0, %v429
      %v431 = vpop.f32.mrb[0].mxu0
      %432 = vmatprep.mubr.bf16.mxu0 %v271
      %433 = vmatmul.mubr.bf16.gmra.mrb[0].mxu0 %v270
      %v434 = vpop.f32.mrb[0].mxu0
      %v435 = vadd.f32 0.0, %v434
      %v436 = vpop.f32.mrb[0].mxu0
      %v437 = vpop.f32.mrb[0].mxu0
      %v438 = vadd.f32 0.0, %v437
      %v439 = vpop.f32.mrb[0].mxu0
      %440 = vdwg.mxu0
      %v441 = vld [vmem:[%s191] sm:$0xff]
      %v442 = vld [vmem:[%s191 + $0x8] sm:$0xff]
      %v443 = vld [vmem:[%s191 + $0x10] sm:$0xff]
      %v444 = vld [vmem:[%s191 + $0x18] sm:$0xff]
      %v445 = vld [vmem:[%s191 + $0x20] sm:$0xff]
      %v446 = vld [vmem:[%s191 + $0x28] sm:$0xff]
      %v447 = vld [vmem:[%s191 + $0x30] sm:$0xff]
      %v448 = vld [vmem:[%s191 + $0x38] sm:$0xff]
      %v449 = vmul.f32 %v411, 1.442695
      %v450 = vpow.pop %v449
      %v451 = vmul.f32 %v414, 1.442695
      %v452 = vpow.pop %v451
      %v453 = vmul.f32 %v419, 1.442695
      %v454 = vpow.pop %v453
      %v455 = vmul.f32 %v422, 1.442695
      %v456 = vpow.pop %v455
      %v457 = vmul.f32 %v427, 1.442695
      %v458 = vpow.pop %v457
      %v459 = vmul.f32 %v430, 1.442695
      %v460 = vpow.pop %v459
      %v461 = vmul.f32 %v435, 1.442695
      %v462 = vpow.pop %v461
      %v463 = vmul.f32 %v438, 1.442695
      %v464 = vpow.pop %v463
      %473 = vrot.lane.b32.xlu0 %v450, 112
      %v474 = vpop.permute.xlu0 %473
      %475 = vrot.lane.b32.xlu0 %v452, 112
      %v476 = vpop.permute.xlu0 %475
      %477 = vrot.lane.b32.xlu0 %v454, 112
      %v478 = vpop.permute.xlu0 %477
      %479 = vrot.lane.b32.xlu0 %v456, 112
      %v480 = vpop.permute.xlu0 %479
      %481 = vrot.lane.b32.xlu0 %v458, 112
      %v482 = vpop.permute.xlu0 %481
      %483 = vrot.lane.b32.xlu0 %v460, 112
      %v484 = vpop.permute.xlu0 %483
      %485 = vrot.lane.b32.xlu0 %v462, 112
      %v486 = vpop.permute.xlu0 %485
      %487 = vrot.lane.b32.xlu0 %v464, 112
      %v488 = vpop.permute.xlu0 %487
      %v497 = vmul.f32 %v441, %v474
      %v498 = vmul.f32 %v442, %v476
      %v499 = vmul.f32 %v443, %v478
      %v500 = vmul.f32 %v444, %v480
      %v501 = vmul.f32 %v445, %v482
      %v502 = vmul.f32 %v446, %v484
      %v503 = vmul.f32 %v447, %v486
      %v504 = vmul.f32 %v448, %v488
      %v505 = vadd.f32 %v497, %v411
      %v506 = vadd.f32 %v498, %v414
      %v507 = vadd.f32 %v499, %v419
      %v508 = vadd.f32 %v500, %v422
      %v509 = vadd.f32 %v501, %v427
      %v510 = vadd.f32 %v502, %v430
      %v511 = vadd.f32 %v503, %v435
      %v512 = vadd.f32 %v504, %v438
      %v513 = vmax.f32 %v505, 0.0
      %v514 = vmax.f32 %v506, 0.0
      %v515 = vmax.f32 %v507, 0.0
      %v516 = vmax.f32 %v508, 0.0
      %v517 = vmax.f32 %v509, 0.0
      %v518 = vmax.f32 %v510, 0.0
      %v519 = vmax.f32 %v511, 0.0
      %v520 = vmax.f32 %v512, 0.0
      %529 = vrot.lane.b32.xlu0 %v513, 16
      %v530 = vpop.permute.xlu0 %529
      %531 = vrot.lane.b32.xlu0 %v514, 16
      %v532 = vpop.permute.xlu0 %531
      %533 = vrot.lane.b32.xlu0 %v515, 16
      %v534 = vpop.permute.xlu0 %533
      %535 = vrot.lane.b32.xlu0 %v516, 16
      %v536 = vpop.permute.xlu0 %535
      %537 = vrot.lane.b32.xlu0 %v517, 16
      %v538 = vpop.permute.xlu0 %537
      %539 = vrot.lane.b32.xlu0 %v518, 16
      %v540 = vpop.permute.xlu0 %539
      %541 = vrot.lane.b32.xlu0 %v519, 16
      %v542 = vpop.permute.xlu0 %541
      %543 = vrot.lane.b32.xlu0 %v520, 16
      %v544 = vpop.permute.xlu0 %543
      %vm553 = vcmask 130048
      %v554 = vsel %vm553, %v505, %v530
      %v555 = vsel %vm553, %v506, %v532
      %v556 = vsel %vm553, %v507, %v534
      %v557 = vsel %vm553, %v508, %v536
      %v558 = vsel %vm553, %v509, %v538
      %v559 = vsel %vm553, %v510, %v540
      %v560 = vsel %vm553, %v511, %v542
      %v561 = vsel %vm553, %v512, %v544
      %v562 = vpack.c.bf16 %v555, %v554
      %v563 = vpack.c.bf16 %v557, %v556
      %v564 = vpack.c.bf16 %v559, %v558
      %v565 = vpack.c.bf16 %v561, %v560
      %v570 = vunpack.c.l.b16 %v562
      %v571 = vunpack.c.h.b16 %v562
      %v572 = vunpack.c.l.b16 %v563
      %v573 = vunpack.c.h.b16 %v563
      %v574 = vunpack.c.l.b16 %v564
      %v575 = vunpack.c.h.b16 %v564
      %v576 = vunpack.c.l.b16 %v565
      %v577 = vunpack.c.h.b16 %v565
      %v578 = vpack.c.b16 %v570, %v570
      %v579 = vpack.c.b16 %v571, %v571
      %v580 = vpack.c.b16 %v572, %v572
      %v581 = vpack.c.b16 %v573, %v573
      %v582 = vpack.c.b16 %v574, %v574
      %v583 = vpack.c.b16 %v575, %v575
      %v584 = vpack.c.b16 %v576, %v576
      %v585 = vpack.c.b16 %v577, %v577
      %vm594 = vcmask 257024
      %595 = vst.msk [vmem:[%s197] sm:$0xf] %vm594, %v578
      %596 = vst.msk [vmem:[%s197 + $0x4] sm:$0xf] %vm594, %v579
      %597 = vst.msk [vmem:[%s197 + $0x8] sm:$0xf] %vm594, %v580
      %598 = vst.msk [vmem:[%s197 + $0xc] sm:$0xf] %vm594, %v581
      %599 = vst.msk [vmem:[%s197 + $0x10] sm:$0xf] %vm594, %v582
      %600 = vst.msk [vmem:[%s197 + $0x14] sm:$0xf] %vm594, %v583
      %601 = vst.msk [vmem:[%s197 + $0x18] sm:$0xf] %vm594, %v584
      %602 = vst.msk [vmem:[%s197 + $0x1c] sm:$0xf] %vm594, %v585
      %s603 = smul.u32 8, %s14
      %p604 = scmp.lt.s32.totalorder %s603, 31
      %s605 = scalar_select %p604, %s603, 31
      %s606 = smul.addr %s605, 4
      %s607 = scalar_lea.vmem %s3, %s606
      // Predicated region
      $region33: #{vgae_forward.4} parent=31 // pred_check
        %p608 = pneg %p105
      $region34: #{vgae_forward.4} parent=31 // pred_check_branch
        %610 = sbr.rel (%p608) target = $region36
      $region35: #{vgae_forward.4} parent=31 // pred_region
        %s611 = smul.u32 8, %s14
      $region36: #{vgae_forward.4} parent=31 // pred_fallthru
        _
    $region32: #{vgae_forward.4} parent=5 // pred_fallthru
      _
    %p612 = scmp.le.s32.totalorder 2, %s9
    // Predicated region
    $region37: #{vgae_forward.4} parent=5 // pred_check
      %p613 = pneg %p612
    $region38: #{vgae_forward.4} parent=5 // pred_check_branch
      %615 = sbr.rel (%p613) target = $region40
    $region39: #{vgae_forward.4} parent=5 // pred_region
      %s616 = ssub.s32 %s9, 2
      // Predicated region
      $region41: #{vgae_forward.4} parent=39 // pred_check
        %p617 = pneg %p111
      $region42: #{vgae_forward.4} parent=39 // pred_check_branch
        %619 = sbr.rel (%p617) target = $region44
      $region43: #{vgae_forward.4} parent=39 // pred_region
        %s620 = smul.u32 8, %s15
        %p621 = scmp.lt.s32.totalorder %s620, 31
        %s622 = scalar_select %p621, %s620, 31
        %s623 = smul.addr %s622, 4
        %s624 = scalar_lea.vmem %s3, %s623
      $region44: #{vgae_forward.4} parent=39 // pred_fallthru
        _
    $region40: #{vgae_forward.4} parent=5 // pred_fallthru
      _
  $region6: #{vgae_forward.4} parent=0 // loop_footer
    %s13 = sadd.s32 1, %s9
  $region7: #{vgae_forward.4} parent=0 // loop_footer_branch
    %8 = sbr.rel target = $region3
  $region8: #{vgae_forward.4} parent=0 // loop_exit
    _

// kernel: vgae_forward.3
$region0: #{vgae_forward.3}
  #allocation0 [shape = 'u32[]', space=smem, size = 0x4, offset = 0x4, fixed_abs, tag = 'smem constant byte address 0x4 - core index']
  #allocation1 [shape = 'u32[144,128]{1,0:T(1,128)}', space=vmem, size = 0x12000, scoped, tag = 'internal scratch']
  %s0 = inlined_call_operand.hbm [shape: bf16[256,256], index: 0, kind: input, shape index: {}]
  %s1 = inlined_call_operand.vmem [shape: bf16[256,16], index: 1, kind: input, shape index: {}]
  %s2 = inlined_call_operand.vmem [shape: bf16[16,32], index: 2, kind: input, shape index: {}]
  %s3 = inlined_call_operand.vmem [shape: bf16[32,32], index: 3, kind: input, shape index: {}]
  %s4 = inlined_call_operand.vmem [shape: bf16[256,32], index: 4, kind: output, shape index: {}]
  %s5 = sld [smem:[#allocation0]]
  $region53: #{vgae_forward.3} parent=0
    _
  %s7 = ssub.s32 1, %s5
  %s8 = scalar_select 0, %s7, %s5
  $region1: #{vgae_forward.3} parent=0
    #allocation2 [shape = 'u8[65536]{0}', space=vmem, size = 0x10000, scoped, tag = 'input window, operand 0']
    #allocation3 [shape = 's32[2]{0}', space=sflag, size = 0x8, scoped, tag = 'scoped memory for vgae_forward.3']
    %9 = vsyncpa [#allocation3], 0
    %s10 = scalar_lea.sflag [#allocation3], 1
    %11 = vsyncpa %s10, 0
    loop: start=0, step=1, limit=6
    $region2: #{vgae_forward.3} parent=1 // loop_pre_header
      _
    $region3: #{vgae_forward.3} parent=1 // loop_header
      %s13 = sphi 0, %s17
      %p14 = scmp.ge.s32.totalorder %s13, 6
      %s23 = sphi 0, %s25
      %s26 = sphi 0, %s23
      %s27 = sphi 0, %s26
      %s43 = sphi 0, %s27
      %s47 = sphi 0, %s47
      %s49 = sphi 0, %s47
      %s50 = sphi 0, %s49
      %s64 = sphi 0, %s50
      %s68 = sphi 0, %s68
      %s70 = sphi 0, %s68
      %s71 = sphi 0, %s70
      %s85 = sphi 0, %s71
      %s89 = sphi 0, %s89
      %s91 = sphi 0, %s89
      %s92 = sphi 0, %s91
      %s106 = sphi 0, %s92
      %s112 = sphi 0, %s114
      %s115 = sphi 0, %s112
      %s116 = sphi 0, %s115
      %s132 = sphi 0, %s116
    $region4: #{vgae_forward.3} parent=1 // loop_header_branch
      %16 = sbr.rel (%p14) target = $region8
    $region5: #{vgae_forward.3} parent=1 // loop_body
      %s18 = ssub.s32 %s13, 1
      %s19 = ssub.s32 %s13, 2
      %s20 = sadd.s32 %s13, 1
      %s21 = ssub.s32 %s13, %s20
      %p22 = scmp.eq.s32.totalorder %s21, 0
      %s24 = sadd.s32 %s23, 1
      %s25 = scalar_select %p22, %s23, %s24
      %p28 = pneg %p22
      %p29 = scmp.eq.s32.totalorder %s13, 3
      %p30 = por %p28, %p29
      %p31 = scmp.ne.s32.totalorder %s23, %s26
      %p32 = scmp.eq.s32.totalorder %s13, 0
      %p33 = por %p31, %p32
      %p34 = scmp.ne.s32.totalorder %s23, %s26
      %p35 = scmp.eq.s32.totalorder %s18, 3
      %p36 = por %p34, %p35
      %p37 = scmp.ne.s32.totalorder %s26, %s27
      %p38 = scmp.eq.s32.totalorder %s18, 0
      %p39 = por %p37, %p38
      %p40 = scmp.ne.s32.totalorder %s26, %s27
      %p41 = scmp.eq.s32.totalorder %s19, 3
      %p42 = por %p40, %p41
      %p44 = scmp.ne.s32.totalorder %s27, %s43
      %p45 = scmp.eq.s32.totalorder %s19, 0
      %p46 = por %p44, %p45
      %s48 = sadd.s32 %s47, 1
      %p51 = scmp.eq.s32.totalorder %s13, 3
      %p52 = scmp.ne.s32.totalorder %s47, %s49
      %p53 = scmp.eq.s32.totalorder %s13, 0
      %p54 = por %p52, %p53
      %p55 = scmp.ne.s32.totalorder %s47, %s49
      %p56 = scmp.eq.s32.totalorder %s18, 3
      %p57 = por %p55, %p56
      %p58 = scmp.ne.s32.totalorder %s49, %s50
      %p59 = scmp.eq.s32.totalorder %s18, 0
      %p60 = por %p58, %p59
      %p61 = scmp.ne.s32.totalorder %s49, %s50
      %p62 = scmp.eq.s32.totalorder %s19, 3
      %p63 = por %p61, %p62
      %p65 = scmp.ne.s32.totalorder %s50, %s64
      %p66 = scmp.eq.s32.totalorder %s19, 0
      %p67 = por %p65, %p66
      %s69 = sadd.s32 %s68, 1
      %p72 = scmp.eq.s32.totalorder %s13, 3
      %p73 = scmp.ne.s32.totalorder %s68, %s70
      %p74 = scmp.eq.s32.totalorder %s13, 0
      %p75 = por %p73, %p74
      %p76 = scmp.ne.s32.totalorder %s68, %s70
      %p77 = scmp.eq.s32.totalorder %s18, 3
      %p78 = por %p76, %p77
      %p79 = scmp.ne.s32.totalorder %s70, %s71
      %p80 = scmp.eq.s32.totalorder %s18, 0
      %p81 = por %p79, %p80
      %p82 = scmp.ne.s32.totalorder %s70, %s71
      %p83 = scmp.eq.s32.totalorder %s19, 3
      %p84 = por %p82, %p83
      %p86 = scmp.ne.s32.totalorder %s71, %s85
      %p87 = scmp.eq.s32.totalorder %s19, 0
      %p88 = por %p86, %p87
      %s90 = sadd.s32 %s89, 1
      %p93 = scmp.eq.s32.totalorder %s13, 3
      %p94 = scmp.ne.s32.totalorder %s89, %s91
      %p95 = scmp.eq.s32.totalorder %s13, 0
      %p96 = por %p94, %p95
      %p97 = scmp.ne.s32.totalorder %s89, %s91
      %p98 = scmp.eq.s32.totalorder %s18, 3
      %p99 = por %p97, %p98
      %p100 = scmp.ne.s32.totalorder %s91, %s92
      %p101 = scmp.eq.s32.totalorder %s18, 0
      %p102 = por %p100, %p101
      %p103 = scmp.ne.s32.totalorder %s91, %s92
      %p104 = scmp.eq.s32.totalorder %s19, 3
      %p105 = por %p103, %p104
      %p107 = scmp.ne.s32.totalorder %s92, %s106
      %p108 = scmp.eq.s32.totalorder %s19, 0
      %p109 = por %p107, %p108
      %s110 = ssub.s32 %s13, %s20
      %p111 = scmp.eq.s32.totalorder %s110, 0
      %s113 = sadd.s32 %s112, 1
      %s114 = scalar_select %p111, %s112, %s113
      %p117 = pneg %p111
      %p118 = scmp.eq.s32.totalorder %s13, 3
      %p119 = por %p117, %p118
      %p120 = scmp.ne.s32.totalorder %s112, %s115
      %p121 = scmp.eq.s32.totalorder %s13, 0
      %p122 = por %p120, %p121
      %p123 = scmp.ne.s32.totalorder %s112, %s115
      %p124 = scmp.eq.s32.totalorder %s18, 3
      %p125 = por %p123, %p124
      %p126 = scmp.ne.s32.totalorder %s115, %s116
      %p127 = scmp.eq.s32.totalorder %s18, 0
      %p128 = por %p126, %p127
      %p129 = scmp.ne.s32.totalorder %s115, %s116
      %p130 = scmp.eq.s32.totalorder %s19, 3
      %p131 = por %p129, %p130
      %p133 = scmp.ne.s32.totalorder %s116, %s132
      %p134 = scmp.eq.s32.totalorder %s19, 0
      %p135 = por %p133, %p134
      %p136 = scmp.le.s32.totalorder 1, %s13
      %p137 = scmp.lt.s32.totalorder %s13, 5
      %p138 = pnand %p136, %p137
      %p139 = pneg %p138
      // Predicated region
      $region9: #{vgae_forward.3} parent=5 // pred_check
        _
      $region10: #{vgae_forward.3} parent=5 // pred_check_branch
        %141 = sbr.rel (%p138) target = $region12
      $region11: #{vgae_forward.3} parent=5 // pred_region
        %s142 = ssub.s32 %s13, 1
        // Predicated region
        $region13: #{vgae_forward.3} parent=11 // pred_check
          %p143 = pneg %p60
        $region14: #{vgae_forward.3} parent=11 // pred_check_branch
          %145 = sbr.rel (%p143) target = $region16
        $region15: #{vgae_forward.3} parent=11 // pred_region
          _
        $region16: #{vgae_forward.3} parent=11 // pred_fallthru
          _
        // Predicated region
        $region17: #{vgae_forward.3} parent=11 // pred_check
          %p146 = pneg %p81
        $region18: #{vgae_forward.3} parent=11 // pred_check_branch
          %148 = sbr.rel (%p146) target = $region20
        $region19: #{vgae_forward.3} parent=11 // pred_region
          _
        $region20: #{vgae_forward.3} parent=11 // pred_fallthru
          _
        // Predicated region
        $region21: #{vgae_forward.3} parent=11 // pred_check
          %p149 = pneg %p102
        $region22: #{vgae_forward.3} parent=11 // pred_check_branch
          %151 = sbr.rel (%p149) target = $region24
        $region23: #{vgae_forward.3} parent=11 // pred_region
          _
        $region24: #{vgae_forward.3} parent=11 // pred_fallthru
          _
      $region12: #{vgae_forward.3} parent=5 // pred_fallthru
        _
      %p152 = scmp.lt.s32.totalorder %s13, 4
      // Predicated region
      $region25: #{vgae_forward.3} parent=5 // pred_check
        %p153 = pneg %p152
      $region26: #{vgae_forward.3} parent=5 // pred_check_branch
        %155 = sbr.rel (%p153) target = $region28
      $region27: #{vgae_forward.3} parent=5 // pred_region
        // Predicated region
        $region29: #{vgae_forward.3} parent=27 // pred_check
          %p156 = pneg %p33
        $region30: #{vgae_forward.3} parent=27 // pred_check_branch
          %158 = sbr.rel (%p156) target = $region32
        $region31: #{vgae_forward.3} parent=27 // pred_region
          %s159 = sand.u32 %s23, 1
          %s160 = scalar_lea.sflag [#allocation3], %s159
          %s161 = sand.u32 %s23, 1
          %s162 = smul.addr %s161, 64
          %s163 = scalar_lea.vmem [#allocation2], %s162
          %s164 = smul.u32 8, %s13
          %s166 = ssub.s32 1024, 1024
          %167 = vsyncadd %s160, %s166
          %s168 = smul.addr %s164, 2
          %s169 = smul.addr %s168, 64
          %s170 = scalar_lea.hbm %s0, %s169
          %s171 = sshll.u32 %s163, 4
          %s172 = int_to_ptr.vmem [resolvable:$true] %s171
          %177 = dma.hbm_to_vmem [thread:$0]  %s170, 1024, %s172, %s160, 128, 128, 8
        $region32: #{vgae_forward.3} parent=27 // pred_fallthru
          _
      $region28: #{vgae_forward.3} parent=5 // pred_fallthru
        _
      %p178 = scmp.le.s32.totalorder 1, %s13
      %p179 = scmp.lt.s32.totalorder %s13, 5
      %p180 = pnand %p178, %p179
      %p181 = pneg %p180
      // Predicated region
      $region33: #{vgae_forward.3} parent=5 // pred_check
        _
      $region34: #{vgae_forward.3} parent=5 // pred_check_branch
        %183 = sbr.rel (%p180) target = $region36
      $region35: #{vgae_forward.3} parent=5 // pred_region
        %s184 = ssub.s32 %s13, 1
        %s185 = sand.u32 %s26, 1
        %s186 = scalar_lea.sflag [#allocation3], %s185
        %s187 = sand.u32 %s26, 1
        %s188 = smul.addr %s187, 64
        %s189 = scalar_lea.vmem [#allocation2], %s188
        // Predicated region
        $region37: #{vgae_forward.3} parent=35 // pred_check
          %p190 = pneg %p39
        $region38: #{vgae_forward.3} parent=35 // pred_check_branch
          %192 = sbr.rel (%p190) target = $region40
        $region39: #{vgae_forward.3} parent=35 // pred_region
          %193 = dma.done %s186, 1024
        $region40: #{vgae_forward.3} parent=35 // pred_fallthru
          _
        %s194 = sand.u32 %s26, 1
        %s195 = scalar_lea.sflag [#allocation3], %s194
        %s196 = sand.u32 %s26, 1
        %s197 = smul.addr %s196, 64
        %s198 = scalar_lea.vmem [#allocation2], %s197
        %p199 = pneg %p39
        %p200 = pneg %p36
        %p201 = pneg %p60
        %p202 = pneg %p57
        %p203 = pneg %p81
        %p204 = pneg %p78
        %p205 = pneg %p102
        %p206 = pneg %p99
        %p207 = pneg %p128
        %p208 = pneg %p125
        %s209 = smul.u32 8, %s18
        %p210 = scmp.lt.s32.totalorder %s209, 31
        %s211 = scalar_select %p210, %s209, 31
        %s212 = smul.addr %s211, 4
        %s213 = scalar_lea.vmem %s4, %s212
        %s214 = smul.u32 8, %s18
        %s215 = smul.u32 8, %s18
        %p216 = scmp.lt.s32.totalorder %s215, 31
        %s217 = scalar_select %p216, %s215, 31
        %s218 = smul.addr %s217, 4
        %s219 = scalar_lea.vmem %s4, %s218
        %s220 = smul.u32 8, %s18
        %v222 = vld [vmem:[%s189] sm:$0xff]
        %v223 = vld [vmem:[%s189 + $0x8] sm:$0xff]
        %v224 = vld [vmem:[%s189 + $0x10] sm:$0xff]
        %v225 = vld [vmem:[%s189 + $0x18] sm:$0xff]
        %v226 = vld [vmem:[%s189 + $0x20] sm:$0xff]
        %v227 = vld [vmem:[%s189 + $0x28] sm:$0xff]
        %v228 = vld [vmem:[%s189 + $0x30] sm:$0xff]
        %v229 = vld [vmem:[%s189 + $0x38] sm:$0xff]
        %v230 = vld [vmem:[%s1] sm:$0xf]
        %v231 = vld [vmem:[%s1 + $0x4] sm:$0xf]
        %v232 = vld [vmem:[%s1 + $0x8] sm:$0xf]
        %v233 = vld [vmem:[%s1 + $0xc] sm:$0xf]
        %v234 = vld [vmem:[%s1 + $0x10] sm:$0xf]
        %v235 = vld [vmem:[%s1 + $0x14] sm:$0xf]
        %v236 = vld [vmem:[%s1 + $0x18] sm:$0xf]
        %v237 = vld [vmem:[%s1 + $0x1c] sm:$0xf]
        %v238 = vld [vmem:[%s1 + $0x20] sm:$0xf]
        %v239 = vld [vmem:[%s1 + $0x24] sm:$0xf]
        %v240 = vld [vmem:[%s1 + $0x28] sm:$0xf]
        %v241 = vld [vmem:[%s1 + $0x2c] sm:$0xf]
        %v242 = vld [vmem:[%s1 + $0x30] sm:$0xf]
        %v243 = vld [vmem:[%s1 + $0x34] sm:$0xf]
        %v244 = vld [vmem:[%s1 + $0x38] sm:$0xf]
        %v245 = vld [vmem:[%s1 + $0x3c] sm:$0xf]
        %v246 = vld [vmem:[%s1 + $0x40] sm:$0xf]
        %v247 = vld [vmem:[%s1 + $0x44] sm:$0xf]
        %v248 = vld [vmem:[%s1 + $0x48] sm:$0xf]
        %v249 = vld [vmem:[%s1 + $0x4c] sm:$0xf]
        %v250 = vld [vmem:[%s1 + $0x50] sm:$0xf]
        %v251 = vld [vmem:[%s1 + $0x54] sm:$0xf]
        %v252 = vld [vmem:[%s1 + $0x58] sm:$0xf]
        %v253 = vld [vmem:[%s1 + $0x5c] sm:$0xf]
        %v254 = vld [vmem:[%s1 + $0x60] sm:$0xf]
        %v255 = vld [vmem:[%s1 + $0x64] sm:$0xf]
        %v256 = vld [vmem:[%s1 + $0x68] sm:$0xf]
        %v257 = vld [vmem:[%s1 + $0x6c] sm:$0xf]
        %v258 = vld [vmem:[%s1 + $0x70] sm:$0xf]
        %v259 = vld [vmem:[%s1 + $0x74] sm:$0xf]
        %v260 = vld [vmem:[%s1 + $0x78] sm:$0xf]
        %v261 = vld [vmem:[%s1 + $0x7c] sm:$0xf]
        %v270 = vunpack.c.l.b16 %v222
        %v271 = vunpack.c.h.b16 %v222
        %v272 = vunpack.c.l.b16 %v223
        %v273 = vunpack.c.h.b16 %v223
        %v274 = vunpack.c.l.b16 %v224
        %v275 = vunpack.c.h.b16 %v224
        %v276 = vunpack.c.l.b16 %v225
        %v277 = vunpack.c.h.b16 %v225
        %v278 = vunpack.c.l.b16 %v226
        %v279 = vunpack.c.h.b16 %v226
        %v280 = vunpack.c.l.b16 %v227
        %v281 = vunpack.c.h.b16 %v227
        %v282 = vunpack.c.l.b16 %v228
        %v283 = vunpack.c.h.b16 %v228
        %v284 = vunpack.c.l.b16 %v229
        %v285 = vunpack.c.h.b16 %v229
        %v286 = vpack.c.b16 %v272, %v270
        %v287 = vpack.c.b16 %v273, %v271
        %v288 = vpack.c.b16 %v276, %v274
        %v289 = vpack.c.b16 %v277, %v275
        %v290 = vpack.c.b16 %v280, %v278
        %v291 = vpack.c.b16 %v281, %v279
        %v292 = vpack.c.b16 %v284, %v282
        %v293 = vpack.c.b16 %v285, %v283
        %v334 = vunpack.c.l.b16 %v230
        %v335 = vunpack.c.l.b16 %v231
        %v336 = vunpack.c.l.b16 %v232
        %v337 = vunpack.c.l.b16 %v233
        %v338 = vunpack.c.l.b16 %v234
        %v339 = vunpack.c.l.b16 %v235
        %v340 = vunpack.c.l.b16 %v236
        %v341 = vunpack.c.l.b16 %v237
        %v342 = vunpack.c.l.b16 %v238
        %v343 = vunpack.c.l.b16 %v239
        %v344 = vunpack.c.l.b16 %v240
        %v345 = vunpack.c.l.b16 %v241
        %v346 = vunpack.c.l.b16 %v242
        %v347 = vunpack.c.l.b16 %v243
        %v348 = vunpack.c.l.b16 %v244
        %v349 = vunpack.c.l.b16 %v245
        %v350 = vunpack.c.l.b16 %v246
        %v351 = vunpack.c.l.b16 %v247
        %v352 = vunpack.c.l.b16 %v248
        %v353 = vunpack.c.l.b16 %v249
        %v354 = vunpack.c.l.b16 %v250
        %v355 = vunpack.c.l.b16 %v251
        %v356 = vunpack.c.l.b16 %v252
        %v357 = vunpack.c.l.b16 %v253
        %v358 = vunpack.c.l.b16 %v254
        %v359 = vunpack.c.l.b16 %v255
        %v360 = vunpack.c.l.b16 %v256
        %v361 = vunpack.c.l.b16 %v257
        %v362 = vunpack.c.l.b16 %v258
        %v363 = vunpack.c.l.b16 %v259
        %v364 = vunpack.c.l.b16 %v260
        %v365 = vunpack.c.l.b16 %v261
        %v366 = vpack.c.b16 %v335, %v334
        %v367 = vpack.c.b16 %v337, %v336
        %v368 = vpack.c.b16 %v339, %v338
        %v369 = vpack.c.b16 %v341, %v340
        %v370 = vpack.c.b16 %v343, %v342
        %v371 = vpack.c.b16 %v345, %v344
        %v372 = vpack.c.b16 %v347, %v346
        %v373 = vpack.c.b16 %v349, %v348
        %v374 = vpack.c.b16 %v351, %v350
        %v375 = vpack.c.b16 %v353, %v352
        %v376 = vpack.c.b16 %v355, %v354
        %v377 = vpack.c.b16 %v357, %v356
        %v378 = vpack.c.b16 %v359, %v358
        %v379 = vpack.c.b16 %v361, %v360
        %v380 = vpack.c.b16 %v363, %v362
        %v381 = vpack.c.b16 %v365, %v364
        %398 = vmatprep.subr.bf16.mxu0 0
        %399 = vmatpush1.bf16.msra.mxu0 %v366
        %400 = vmatprep.subr.bf16.mxu0 0
        %401 = vmatpush1.bf16.msra.mxu0 %v367
        %402 = vmatprep.subr.bf16.mxu0 0
        %403 = vmatpush1.bf16.msra.mxu0 %v368
        %404 = vmatprep.subr.bf16.mxu0 0
        %405 = vmatpush1.bf16.msra.mxu0 %v369
        %406 = vmatprep.subr.bf16.mxu0 0
        %407 = vmatpush1.bf16.msra.mxu0 %v370
        %408 = vmatprep.subr.bf16.mxu0 0
        %409 = vmatpush1.bf16.msra.mxu0 %v371
        %410 = vmatprep.subr.bf16.mxu0 0
        %411 = vmatpush1.bf16.msra.mxu0 %v372
        %412 = vmatprep.subr.bf16.mxu0 0
        %413 = vmatpush1.bf16.msra.mxu0 %v373
        %414 = vmatprep.subr.bf16.mxu0 0
        %415 = vmatpush1.bf16.msra.mxu0 %v374
        %416 = vmatprep.subr.bf16.mxu0 0
        %417 = vmatpush1.bf16.msra.mxu0 %v375
        %418 = vmatprep.subr.bf16.mxu0 0
        %419 = vmatpush1.bf16.msra.mxu0 %v376
        %420 = vmatprep.subr.bf16.mxu0 0
        %421 = vmatpush1.bf16.msra.mxu0 %v377
        %422 = vmatprep.subr.bf16.mxu0 0
        %423 = vmatpush1.bf16.msra.mxu0 %v378
        %424 = vmatprep.subr.bf16.mxu0 0
        %425 = vmatpush1.bf16.msra.mxu0 %v379
        %426 = vmatprep.subr.bf16.mxu0 0
        %427 = vmatpush1.bf16.msra.mxu0 %v380
        %428 = vmatprep.subr.bf16.mxu0 0
        %429 = vmatpush1.bf16.msra.mxu0 %v381
        %430 = vmatprep.mubr.bf16.mxu0 %v287
        %431 = vmatmul.mubr.bf16.gmra.mrb[0].mxu0 %v286
        %v432 = vpop.f32.mrb[0].mxu0
        %v433 = vadd.f32 0.0, %v432
        %v434 = vpop.f32.mrb[0].mxu0
        %v435 = vpop.f32.mrb[0].mxu0
        %v436 = vadd.f32 0.0, %v435
        %v437 = vpop.f32.mrb[0].mxu0
        %438 = vmatprep.mubr.bf16.mxu0 %v289
        %439 = vmatmul.mubr.bf16.gmra.mrb[0].mxu0 %v288
        %v440 = vpop.f32.mrb[0].mxu0
        %v441 = vadd.f32 0.0, %v440
        %v442 = vpop.f32.mrb[0].mxu0
        %v443 = vpop.f32.mrb[0].mxu0
        %v444 = vadd.f32 0.0, %v443
        %v445 = vpop.f32.mrb[0].mxu0
        %446 = vmatprep.mubr.bf16.mxu0 %v291
        %447 = vmatmul.mubr.bf16.gmra.mrb[0].mxu0 %v290
        %v448 = vpop.f32.mrb[0].mxu0
        %v449 = vadd.f32 0.0, %v448
        %v450 = vpop.f32.mrb[0].mxu0
        %v451 = vpop.f32.mrb[0].mxu0
        %v452 = vadd.f32 0.0, %v451
        %v453 = vpop.f32.mrb[0].mxu0
        %454 = vmatprep.mubr.bf16.mxu0 %v293
        %455 = vmatmul.mubr.bf16.gmra.mrb[0].mxu0 %v292
        %v456 = vpop.f32.mrb[0].mxu0
        %v457 = vadd.f32 0.0, %v456
        %v458 = vpop.f32.mrb[0].mxu0
        %v459 = vpop.f32.mrb[0].mxu0
        %v460 = vadd.f32 0.0, %v459
        %v461 = vpop.f32.mrb[0].mxu0
        %462 = vdwg.mxu0
        %v463 = vpack.c.bf16 %v436, %v433
        %v464 = vpack.c.bf16 %v444, %v441
        %v465 = vpack.c.bf16 %v452, %v449
        %v466 = vpack.c.bf16 %v460, %v457
        %v467 = vld [vmem:[%s2] sm:$0xf]
        %v468 = vld [vmem:[%s2 + $0x4] sm:$0xf]
        %v471 = vunpack.c.l.b16 %v467
        %v472 = vunpack.c.l.b16 %v468
        %v473 = vpack.c.b16 %v472, %v471
        %vm475 = vcmask 130048
        %v477 = vsel %vm475, %v463, 0
        %v480 = vsel %vm475, %v464, 0
        %v483 = vsel %vm475, %v465, 0
        %v486 = vsel %vm475, %v466, 0
        %488 = vmatprep.subr.bf16.mxu0 0
        %489 = vmatpush1.bf16.msra.mxu0 %v473
        %490 = vmatprep.subr.bf16.mxu0 0
        %491 = vmatpush1.bf16.msra.mxu0 0
        %492 = vmatprep.subr.bf16.mxu0 0
        %493 = vmatpush1.bf16.msra.mxu0 0
        %494 = vmatprep.subr.bf16.mxu0 0
        %495 = vmatpush1.bf16.msra.mxu0 0
        %496 = vmatprep.subr.bf16.mxu0 0
        %497 = vmatpush1.bf16.msra.mxu0 0
        %498 = vmatprep.subr.bf16.mxu0 0
        %499 = vmatpush1.bf16.msra.mxu0 0
        %500 = vmatprep.subr.bf16.mxu0 0
        %501 = vmatpush1.bf16.msra.mxu0 0
        %502 = vmatprep.subr.bf16.mxu0 0
        %503 = vmatpush1.bf16.msra.mxu0 0
        %504 = vmatprep.subr.bf16.mxu0 0
        %505 = vmatpush1.bf16.msra.mxu0 0
        %506 = vmatprep.subr.bf16.mxu0 0
        %507 = vmatpush1.bf16.msra.mxu0 0
        %508 = vmatprep.subr.bf16.mxu0 0
        %509 = vmatpush1.bf16.msra.mxu0 0
        %510 = vmatprep.subr.bf16.mxu0 0
        %511 = vmatpush1.bf16.msra.mxu0 0
        %512 = vmatprep.subr.bf16.mxu0 0
        %513 = vmatpush1.bf16.msra.mxu0 0
        %514 = vmatprep.subr.bf16.mxu0 0
        %515 = vmatpush1.bf16.msra.mxu0 0
        %516 = vmatprep.subr.bf16.mxu0 0
        %517 = vmatpush1.bf16.msra.mxu0 0
        %518 = vmatprep.subr.bf16.mxu0 0
        %519 = vmatpush1.bf16.msra.mxu0 0
        %520 = vmatprep.mubr.bf16.mxu0 0
        %521 = vmatmul.mubr.bf16.gmra.mrb[0].mxu0 %v477
        %v522 = vpop.f32.mrb[0].mxu0
        %v523 = vadd.f32 0.0, %v522
        %v524 = vpop.f32.mrb[0].mxu0
        %v525 = vpop.f32.mrb[0].mxu0
        %v526 = vadd.f32 0.0, %v525
        %v527 = vpop.f32.mrb[0].mxu0
        %528 = vmatprep.mubr.bf16.mxu0 0
        %529 = vmatmul.mubr.bf16.gmra.mrb[0].mxu0 %v480
        %v530 = vpop.f32.mrb[0].mxu0
        %v531 = vadd.f32 0.0, %v530
        %v532 = vpop.f32.mrb[0].mxu0
        %v533 = vpop.f32.mrb[0].mxu0
        %v534 = vadd.f32 0.0, %v533
        %v535 = vpop.f32.mrb[0].mxu0
        %536 = vmatprep.mubr.bf16.mxu0 0
        %537 = vmatmul.mubr.bf16.gmra.mrb[0].mxu0 %v483
        %v538 = vpop.f32.mrb[0].mxu0
        %v539 = vadd.f32 0.0, %v538
        %v540 = vpop.f32.mrb[0].mxu0
        %v541 = vpop.f32.mrb[0].mxu0
        %v542 = vadd.f32 0.0, %v541
        %v543 = vpop.f32.mrb[0].mxu0
        %544 = vmatprep.mubr.bf16.mxu0 0
        %545 = vmatmul.mubr.bf16.gmra.mrb[0].mxu0 %v486
        %v546 = vpop.f32.mrb[0].mxu0
        %v547 = vadd.f32 0.0, %v546
        %v548 = vpop.f32.mrb[0].mxu0
        %v549 = vpop.f32.mrb[0].mxu0
        %v550 = vadd.f32 0.0, %v549
        %v551 = vpop.f32.mrb[0].mxu0
        %552 = vdwg.mxu0
        %v553 = vmax.f32 %v523, 0.0
        %v554 = vmax.f32 %v526, 0.0
        %v555 = vmax.f32 %v531, 0.0
        %v556 = vmax.f32 %v534, 0.0
        %v557 = vmax.f32 %v539, 0.0
        %v558 = vmax.f32 %v542, 0.0
        %v559 = vmax.f32 %v547, 0.0
        %v560 = vmax.f32 %v550, 0.0
        %v561 = vpack.c.bf16 %v554, %v553
        %v562 = vpack.c.bf16 %v556, %v555
        %v563 = vpack.c.bf16 %v558, %v557
        %v564 = vpack.c.bf16 %v560, %v559
        %v565 = vld [vmem:[%s3] sm:$0xf]
        %v566 = vld [vmem:[%s3 + $0x4] sm:$0xf]
        %v567 = vld [vmem:[%s3 + $0x8] sm:$0xf]
        %v568 = vld [vmem:[%s3 + $0xc] sm:$0xf]
        %v573 = vunpack.c.l.b16 %v565
        %v574 = vunpack.c.l.b16 %v566
        %v575 = vunpack.c.l.b16 %v567
        %v576 = vunpack.c.l.b16 %v568
        %v577 = vpack.c.b16 %v574, %v573
        %v578 = vpack.c.b16 %v576, %v575
        %vm581 = vcmask 261120
        %v583 = vsel %vm581, %v561, 0
        %v586 = vsel %vm581, %v562, 0
        %v589 = vsel %vm581, %v563, 0
        %v592 = vsel %vm581, %v564, 0
        %594 = vmatprep.subr.bf16.mxu0 0
        %595 = vmatpush1.bf16.msra.mxu0 %v577
        %596 = vmatprep.subr.bf16.mxu0 0
        %597 = vmatpush1.bf16.msra.mxu0 %v578
        %598 = vmatprep.subr.bf16.mxu0 0
        %599 = vmatpush1.bf16.msra.mxu0 0
        %600 = vmatprep.subr.bf16.mxu0 0
        %601 = vmatpush1.bf16.msra.mxu0 0
        %602 = vmatprep.subr.bf16.mxu0 0
        %603 = vmatpush1.bf16.msra.mxu0 0
        %604 = vmatprep.subr.bf16.mxu0 0
        %605 = vmatpush1.bf16.msra.mxu0 0
        %606 = vmatprep.subr.bf16.mxu0 0
        %607 = vmatpush1.bf16.msra.mxu0 0
        %608 = vmatprep.subr.bf16.mxu0 0
        %609 = vmatpush1.bf16.msra.mxu0 0
        %610 = vmatprep.subr.bf16.mxu0 0
        %611 = vmatpush1.bf16.msra.mxu0 0
        %612 = vmatprep.subr.bf16.mxu0 0
        %613 = vmatpush1.bf16.msra.mxu0 0
        %614 = vmatprep.subr.bf16.mxu0 0
        %615 = vmatpush1.bf16.msra.mxu0 0
        %616 = vmatprep.subr.bf16.mxu0 0
        %617 = vmatpush1.bf16.msra.mxu0 0
        %618 = vmatprep.subr.bf16.mxu0 0
        %619 = vmatpush1.bf16.msra.mxu0 0
        %620 = vmatprep.subr.bf16.mxu0 0
        %621 = vmatpush1.bf16.msra.mxu0 0
        %622 = vmatprep.subr.bf16.mxu0 0
        %623 = vmatpush1.bf16.msra.mxu0 0
        %624 = vmatprep.subr.bf16.mxu0 0
        %625 = vmatpush1.bf16.msra.mxu0 0
        %626 = vmatprep.mubr.bf16.mxu0 0
        %627 = vmatmul.mubr.bf16.gmra.mrb[0].mxu0 %v583
        %v628 = vpop.f32.mrb[0].mxu0
        %v629 = vadd.f32 0.0, %v628
        %v630 = vpop.f32.mrb[0].mxu0
        %v631 = vpop.f32.mrb[0].mxu0
        %v632 = vadd.f32 0.0, %v631
        %v633 = vpop.f32.mrb[0].mxu0
        %634 = vmatprep.mubr.bf16.mxu0 0
        %635 = vmatmul.mubr.bf16.gmra.mrb[0].mxu0 %v586
        %v636 = vpop.f32.mrb[0].mxu0
        %v637 = vadd.f32 0.0, %v636
        %v638 = vpop.f32.mrb[0].mxu0
        %v639 = vpop.f32.mrb[0].mxu0
        %v640 = vadd.f32 0.0, %v639
        %v641 = vpop.f32.mrb[0].mxu0
        %642 = vmatprep.mubr.bf16.mxu0 0
        %643 = vmatmul.mubr.bf16.gmra.mrb[0].mxu0 %v589
        %v644 = vpop.f32.mrb[0].mxu0
        %v645 = vadd.f32 0.0, %v644
        %v646 = vpop.f32.mrb[0].mxu0
        %v647 = vpop.f32.mrb[0].mxu0
        %v648 = vadd.f32 0.0, %v647
        %v649 = vpop.f32.mrb[0].mxu0
        %650 = vmatprep.mubr.bf16.mxu0 0
        %651 = vmatmul.mubr.bf16.gmra.mrb[0].mxu0 %v592
        %v652 = vpop.f32.mrb[0].mxu0
        %v653 = vadd.f32 0.0, %v652
        %v654 = vpop.f32.mrb[0].mxu0
        %v655 = vpop.f32.mrb[0].mxu0
        %v656 = vadd.f32 0.0, %v655
        %v657 = vpop.f32.mrb[0].mxu0
        %658 = vdwg.mxu0
        %v659 = vpack.c.bf16 %v632, %v629
        %v660 = vpack.c.bf16 %v640, %v637
        %v661 = vpack.c.bf16 %v648, %v645
        %v662 = vpack.c.bf16 %v656, %v653
        %v667 = vunpack.c.l.b16 %v659
        %v668 = vunpack.c.h.b16 %v659
        %v669 = vunpack.c.l.b16 %v660
        %v670 = vunpack.c.h.b16 %v660
        %v671 = vunpack.c.l.b16 %v661
        %v672 = vunpack.c.h.b16 %v661
        %v673 = vunpack.c.l.b16 %v662
        %v674 = vunpack.c.h.b16 %v662
        %v675 = vpack.c.b16 %v667, %v667
        %v676 = vpack.c.b16 %v668, %v668
        %v677 = vpack.c.b16 %v669, %v669
        %v678 = vpack.c.b16 %v670, %v670
        %v679 = vpack.c.b16 %v671, %v671
        %v680 = vpack.c.b16 %v672, %v672
        %v681 = vpack.c.b16 %v673, %v673
        %v682 = vpack.c.b16 %v674, %v674
        %vm691 = vcmask 257024
        %692 = vst.msk [vmem:[%s219] sm:$0xf] %vm691, %v675
        %693 = vst.msk [vmem:[%s219 + $0x4] sm:$0xf] %vm691, %v676
        %694 = vst.msk [vmem:[%s219 + $0x8] sm:$0xf] %vm691, %v677
        %695 = vst.msk [vmem:[%s219 + $0xc] sm:$0xf] %vm691, %v678
        %696 = vst.msk [vmem:[%s219 + $0x10] sm:$0xf] %vm691, %v679
        %697 = vst.msk [vmem:[%s219 + $0x14] sm:$0xf] %vm691, %v680
        %698 = vst.msk [vmem:[%s219 + $0x18] sm:$0xf] %vm691, %v681
        %699 = vst.msk [vmem:[%s219 + $0x1c] sm:$0xf] %vm691, %v682
        %s700 = smul.u32 8, %s18
        %p701 = scmp.lt.s32.totalorder %s700, 31
        %s702 = scalar_select %p701, %s700, 31
        %s703 = smul.addr %s702, 4
        %s704 = scalar_lea.vmem %s4, %s703
        // Predicated region
        $region41: #{vgae_forward.3} parent=35 // pred_check
          %p705 = pneg %p125
        $region42: #{vgae_forward.3} parent=35 // pred_check_branch
          %707 = sbr.rel (%p705) target = $region44
        $region43: #{vgae_forward.3} parent=35 // pred_region
          %s708 = smul.u32 8, %s18
        $region44: #{vgae_forward.3} parent=35 // pred_fallthru
          _
      $region36: #{vgae_forward.3} parent=5 // pred_fallthru
        _
      %p709 = scmp.le.s32.totalorder 2, %s13
      // Predicated region
      $region45: #{vgae_forward.3} parent=5 // pred_check
        %p710 = pneg %p709
      $region46: #{vgae_forward.3} parent=5 // pred_check_branch
        %712 = sbr.rel (%p710) target = $region48
      $region47: #{vgae_forward.3} parent=5 // pred_region
        %s713 = ssub.s32 %s13, 2
        // Predicated region
        $region49: #{vgae_forward.3} parent=47 // pred_check
          %p714 = pneg %p131
        $region50: #{vgae_forward.3} parent=47 // pred_check_branch
          %716 = sbr.rel (%p714) target = $region52
        $region51: #{vgae_forward.3} parent=47 // pred_region
          %s717 = smul.u32 8, %s19
          %p718 = scmp.lt.s32.totalorder %s717, 31
          %s719 = scalar_select %p718, %s717, 31
          %s720 = smul.addr %s719, 4
          %s721 = scalar_lea.vmem %s4, %s720
        $region52: #{vgae_forward.3} parent=47 // pred_fallthru
          _
      $region48: #{vgae_forward.3} parent=5 // pred_fallthru
        _
    $region6: #{vgae_forward.3} parent=1 // loop_footer
      %s17 = sadd.s32 1, %s13
    $region7: #{vgae_forward.3} parent=1 // loop_footer_branch
      %12 = sbr.rel target = $region3
    $region8: #{vgae_forward.3} parent=1 // loop_exit
      _
    %722 = vsyncpa [#allocation3], 1
    %s723 = scalar_lea.sflag [#allocation3], 1
    %724 = vsyncpa %s723, 1

// kernel: vgae_forward.5
$region0: #{vgae_forward.5}
  #allocation0 [shape = 'u32[]', space=smem, size = 0x4, offset = 0x4, fixed_abs, tag = 'smem constant byte address 0x4 - core index']
  #allocation1 [shape = 'u32[144,128]{1,0:T(1,128)}', space=vmem, size = 0x12000, scoped, tag = 'internal scratch']
  %s0 = inlined_call_operand.vmem [shape: s32[256,2], index: 0, kind: input, shape index: {}]
  %s1 = inlined_call_operand.vmem [shape: bf16[256,32], index: 1, kind: input, shape index: {}]
  %s2 = inlined_call_operand.vmem [shape: f32[1,16], index: 2, kind: input, shape index: {}]
  %s3 = inlined_call_operand.vmem [shape: f32[1,16], index: 3, kind: input, shape index: {}]
  %s4 = inlined_call_operand.vmem [shape: f32[1,16], index: 4, kind: input, shape index: {}]
  %s5 = inlined_call_operand.vmem [shape: f32[1,256], index: 5, kind: output, shape index: {}]
  %s6 = sld [smem:[#allocation0]]
  $region53: #{vgae_forward.5} parent=0
    _
  %s8 = ssub.s32 1, %s6
  %s9 = scalar_select 0, %s8, %s6
  loop: start=0, step=1, limit=4
  $region2: #{vgae_forward.5} parent=0 // loop_pre_header
    _
  $region3: #{vgae_forward.5} parent=0 // loop_header
    %s11 = sphi 0, %s15
    %p12 = scmp.ge.s32.totalorder %s11, 4
    %s21 = sphi 0, %s23
    %s24 = sphi 0, %s21
    %s25 = sphi 0, %s24
    %s41 = sphi 0, %s25
    %s45 = sphi 0, %s45
    %s47 = sphi 0, %s45
    %s48 = sphi 0, %s47
    %s62 = sphi 0, %s48
    %s66 = sphi 0, %s66
    %s68 = sphi 0, %s66
    %s69 = sphi 0, %s68
    %s83 = sphi 0, %s69
    %s87 = sphi 0, %s87
    %s89 = sphi 0, %s87
    %s90 = sphi 0, %s89
    %s104 = sphi 0, %s90
    %s108 = sphi 0, %s108
    %s110 = sphi 0, %s108
    %s111 = sphi 0, %s110
    %s125 = sphi 0, %s111
    %s131 = sphi 0, %s133
    %s134 = sphi 0, %s131
    %s135 = sphi 0, %s134
    %s151 = sphi 0, %s135
  $region4: #{vgae_forward.5} parent=0 // loop_header_branch
    %14 = sbr.rel (%p12) target = $region8
  $region5: #{vgae_forward.5} parent=0 // loop_body
    %s16 = ssub.s32 %s11, 1
    %s17 = ssub.s32 %s11, 2
    %s18 = sadd.s32 %s11, 1
    %s19 = ssub.s32 %s11, %s18
    %p20 = scmp.eq.s32.totalorder %s19, 0
    %s22 = sadd.s32 %s21, 1
    %s23 = scalar_select %p20, %s21, %s22
    %p26 = pneg %p20
    %p27 = scmp.eq.s32.totalorder %s11, 1
    %p28 = por %p26, %p27
    %p29 = scmp.ne.s32.totalorder %s21, %s24
    %p30 = scmp.eq.s32.totalorder %s11, 0
    %p31 = por %p29, %p30
    %p32 = scmp.ne.s32.totalorder %s21, %s24
    %p33 = scmp.eq.s32.totalorder %s16, 1
    %p34 = por %p32, %p33
    %p35 = scmp.ne.s32.totalorder %s24, %s25
    %p36 = scmp.eq.s32.totalorder %s16, 0
    %p37 = por %p35, %p36
    %p38 = scmp.ne.s32.totalorder %s24, %s25
    %p39 = scmp.eq.s32.totalorder %s17, 1
    %p40 = por %p38, %p39
    %p42 = scmp.ne.s32.totalorder %s25, %s41
    %p43 = scmp.eq.s32.totalorder %s17, 0
    %p44 = por %p42, %p43
    %s46 = sadd.s32 %s45, 1
    %p49 = scmp.eq.s32.totalorder %s11, 1
    %p50 = scmp.ne.s32.totalorder %s45, %s47
    %p51 = scmp.eq.s32.totalorder %s11, 0
    %p52 = por %p50, %p51
    %p53 = scmp.ne.s32.totalorder %s45, %s47
    %p54 = scmp.eq.s32.totalorder %s16, 1
    %p55 = por %p53, %p54
    %p56 = scmp.ne.s32.totalorder %s47, %s48
    %p57 = scmp.eq.s32.totalorder %s16, 0
    %p58 = por %p56, %p57
    %p59 = scmp.ne.s32.totalorder %s47, %s48
    %p60 = scmp.eq.s32.totalorder %s17, 1
    %p61 = por %p59, %p60
    %p63 = scmp.ne.s32.totalorder %s48, %s62
    %p64 = scmp.eq.s32.totalorder %s17, 0
    %p65 = por %p63, %p64
    %s67 = sadd.s32 %s66, 1
    %p70 = scmp.eq.s32.totalorder %s11, 1
    %p71 = scmp.ne.s32.totalorder %s66, %s68
    %p72 = scmp.eq.s32.totalorder %s11, 0
    %p73 = por %p71, %p72
    %p74 = scmp.ne.s32.totalorder %s66, %s68
    %p75 = scmp.eq.s32.totalorder %s16, 1
    %p76 = por %p74, %p75
    %p77 = scmp.ne.s32.totalorder %s68, %s69
    %p78 = scmp.eq.s32.totalorder %s16, 0
    %p79 = por %p77, %p78
    %p80 = scmp.ne.s32.totalorder %s68, %s69
    %p81 = scmp.eq.s32.totalorder %s17, 1
    %p82 = por %p80, %p81
    %p84 = scmp.ne.s32.totalorder %s69, %s83
    %p85 = scmp.eq.s32.totalorder %s17, 0
    %p86 = por %p84, %p85
    %s88 = sadd.s32 %s87, 1
    %p91 = scmp.eq.s32.totalorder %s11, 1
    %p92 = scmp.ne.s32.totalorder %s87, %s89
    %p93 = scmp.eq.s32.totalorder %s11, 0
    %p94 = por %p92, %p93
    %p95 = scmp.ne.s32.totalorder %s87, %s89
    %p96 = scmp.eq.s32.totalorder %s16, 1
    %p97 = por %p95, %p96
    %p98 = scmp.ne.s32.totalorder %s89, %s90
    %p99 = scmp.eq.s32.totalorder %s16, 0
    %p100 = por %p98, %p99
    %p101 = scmp.ne.s32.totalorder %s89, %s90
    %p102 = scmp.eq.s32.totalorder %s17, 1
    %p103 = por %p101, %p102
    %p105 = scmp.ne.s32.totalorder %s90, %s104
    %p106 = scmp.eq.s32.totalorder %s17, 0
    %p107 = por %p105, %p106
    %s109 = sadd.s32 %s108, 1
    %p112 = scmp.eq.s32.totalorder %s11, 1
    %p113 = scmp.ne.s32.totalorder %s108, %s110
    %p114 = scmp.eq.s32.totalorder %s11, 0
    %p115 = por %p113, %p114
    %p116 = scmp.ne.s32.totalorder %s108, %s110
    %p117 = scmp.eq.s32.totalorder %s16, 1
    %p118 = por %p116, %p117
    %p119 = scmp.ne.s32.totalorder %s110, %s111
    %p120 = scmp.eq.s32.totalorder %s16, 0
    %p121 = por %p119, %p120
    %p122 = scmp.ne.s32.totalorder %s110, %s111
    %p123 = scmp.eq.s32.totalorder %s17, 1
    %p124 = por %p122, %p123
    %p126 = scmp.ne.s32.totalorder %s111, %s125
    %p127 = scmp.eq.s32.totalorder %s17, 0
    %p128 = por %p126, %p127
    %s129 = ssub.s32 %s11, %s18
    %p130 = scmp.eq.s32.totalorder %s129, 0
    %s132 = sadd.s32 %s131, 1
    %s133 = scalar_select %p130, %s131, %s132
    %p136 = pneg %p130
    %p137 = scmp.eq.s32.totalorder %s11, 1
    %p138 = por %p136, %p137
    %p139 = scmp.ne.s32.totalorder %s131, %s134
    %p140 = scmp.eq.s32.totalorder %s11, 0
    %p141 = por %p139, %p140
    %p142 = scmp.ne.s32.totalorder %s131, %s134
    %p143 = scmp.eq.s32.totalorder %s16, 1
    %p144 = por %p142, %p143
    %p145 = scmp.ne.s32.totalorder %s134, %s135
    %p146 = scmp.eq.s32.totalorder %s16, 0
    %p147 = por %p145, %p146
    %p148 = scmp.ne.s32.totalorder %s134, %s135
    %p149 = scmp.eq.s32.totalorder %s17, 1
    %p150 = por %p148, %p149
    %p152 = scmp.ne.s32.totalorder %s135, %s151
    %p153 = scmp.eq.s32.totalorder %s17, 0
    %p154 = por %p152, %p153
    %p155 = scmp.le.s32.totalorder 1, %s11
    %p156 = scmp.lt.s32.totalorder %s11, 3
    %p157 = pnand %p155, %p156
    %p158 = pneg %p157
    // Predicated region
    $region9: #{vgae_forward.5} parent=5 // pred_check
      _
    $region10: #{vgae_forward.5} parent=5 // pred_check_branch
      %160 = sbr.rel (%p157) target = $region12
    $region11: #{vgae_forward.5} parent=5 // pred_region
      %s161 = ssub.s32 %s11, 1
      // Predicated region
      $region13: #{vgae_forward.5} parent=11 // pred_check
        %p162 = pneg %p58
      $region14: #{vgae_forward.5} parent=11 // pred_check_branch
        %164 = sbr.rel (%p162) target = $region16
      $region15: #{vgae_forward.5} parent=11 // pred_region
        _
      $region16: #{vgae_forward.5} parent=11 // pred_fallthru
        _
      // Predicated region
      $region17: #{vgae_forward.5} parent=11 // pred_check
        %p165 = pneg %p79
      $region18: #{vgae_forward.5} parent=11 // pred_check_branch
        %167 = sbr.rel (%p165) target = $region20
      $region19: #{vgae_forward.5} parent=11 // pred_region
        _
      $region20: #{vgae_forward.5} parent=11 // pred_fallthru
        _
      // Predicated region
      $region21: #{vgae_forward.5} parent=11 // pred_check
        %p168 = pneg %p100
      $region22: #{vgae_forward.5} parent=11 // pred_check_branch
        %170 = sbr.rel (%p168) target = $region24
      $region23: #{vgae_forward.5} parent=11 // pred_region
        _
      $region24: #{vgae_forward.5} parent=11 // pred_fallthru
        _
      // Predicated region
      $region25: #{vgae_forward.5} parent=11 // pred_check
        %p171 = pneg %p121
      $region26: #{vgae_forward.5} parent=11 // pred_check_branch
        %173 = sbr.rel (%p171) target = $region28
      $region27: #{vgae_forward.5} parent=11 // pred_region
        _
      $region28: #{vgae_forward.5} parent=11 // pred_fallthru
        _
    $region12: #{vgae_forward.5} parent=5 // pred_fallthru
      _
    %p174 = scmp.lt.s32.totalorder %s11, 2
    // Predicated region
    $region29: #{vgae_forward.5} parent=5 // pred_check
      %p175 = pneg %p174
    $region30: #{vgae_forward.5} parent=5 // pred_check_branch
      %177 = sbr.rel (%p175) target = $region32
    $region31: #{vgae_forward.5} parent=5 // pred_region
      // Predicated region
      $region33: #{vgae_forward.5} parent=31 // pred_check
        %p178 = pneg %p31
      $region34: #{vgae_forward.5} parent=31 // pred_check_branch
        %180 = sbr.rel (%p178) target = $region36
      $region35: #{vgae_forward.5} parent=31 // pred_region
        %s181 = smul.u32 16, %s11
        %p182 = scmp.lt.s32.totalorder %s181, 31
        %s183 = scalar_select %p182, %s181, 31
        %s184 = smul.addr %s183, 8
        %s185 = scalar_lea.vmem %s0, %s184
        %s186 = smul.u32 16, %s11
      $region36: #{vgae_forward.5} parent=31 // pred_fallthru
        _
    $region32: #{vgae_forward.5} parent=5 // pred_fallthru
      _
    %p187 = scmp.le.s32.totalorder 1, %s11
    %p188 = scmp.lt.s32.totalorder %s11, 3
    %p189 = pnand %p187, %p188
    %p190 = pneg %p189
    // Predicated region
    $region37: #{vgae_forward.5} parent=5 // pred_check
      _
    $region38: #{vgae_forward.5} parent=5 // pred_check_branch
      %192 = sbr.rel (%p189) target = $region40
    $region39: #{vgae_forward.5} parent=5 // pred_region
      %s193 = ssub.s32 %s11, 1
      %s194 = smul.u32 16, %s16
      %p195 = scmp.lt.s32.totalorder %s194, 31
      %s196 = scalar_select %p195, %s194, 31
      %s197 = smul.addr %s196, 8
      %s198 = scalar_lea.vmem %s0, %s197
      %p199 = pneg %p37
      %p200 = pneg %p34
      %p201 = pneg %p58
      %p202 = pneg %p55
      %p203 = pneg %p79
      %p204 = pneg %p76
      %p205 = pneg %p100
      %p206 = pneg %p97
      %p207 = pneg %p121
      %p208 = pneg %p118
      %p209 = pneg %p147
      %p210 = pneg %p144
      %p211 = scmp.lt.s32.totalorder %s16, 1
      %s212 = scalar_select %p211, %s16, 1
      %s213 = scalar_lea.vmem %s5, %s212
      %s214 = smul.u32 16, %s16
      %p215 = scmp.lt.s32.totalorder %s214, 31
      %s216 = scalar_select %p215, %s214, 31
      %s217 = smul.addr %s216, 8
      %s218 = scalar_lea.vmem %s0, %s217
      %s219 = smul.u32 16, %s16
      %p220 = scmp.lt.s32.totalorder %s16, 1
      %s221 = scalar_select %p220, %s16, 1
      %s222 = scalar_lea.vmem %s5, %s221
      %v224 = vld [vmem:[%s218] sm:$0xff]
      %v225 = vld [vmem:[%s218 + $0x8] sm:$0xff]
      %v226 = vld [vmem:[%s218 + $0x10] sm:$0xff]
      %v227 = vld [vmem:[%s218 + $0x18] sm:$0xff]
      %v228 = vld [vmem:[%s218 + $0x20] sm:$0xff]
      %v229 = vld [vmem:[%s218 + $0x28] sm:$0xff]
      %v230 = vld [vmem:[%s218 + $0x30] sm:$0xff]
      %v231 = vld [vmem:[%s218 + $0x38] sm:$0xff]
      %v232 = vld [vmem:[%s218 + $0x40] sm:$0xff]
      %v233 = vld [vmem:[%s218 + $0x48] sm:$0xff]
      %v234 = vld [vmem:[%s218 + $0x50] sm:$0xff]
      %v235 = vld [vmem:[%s218 + $0x58] sm:$0xff]
      %v236 = vld [vmem:[%s218 + $0x60] sm:$0xff]
      %v237 = vld [vmem:[%s218 + $0x68] sm:$0xff]
      %v238 = vld [vmem:[%s218 + $0x70] sm:$0xff]
      %v239 = vld [vmem:[%s218 + $0x78] sm:$0xff]
      %240 = vrot.lane.b32.xlu0 %v224, 127
      %v241 = vpop.permute.xlu0 %240
      %242 = vrot.lane.b32.xlu0 %v225, 127
      %v243 = vpop.permute.xlu0 %242
      %244 = vrot.lane.b32.xlu0 %v226, 127
      %v245 = vpop.permute.xlu0 %244
      %246 = vrot.lane.b32.xlu0 %v227, 127
      %v247 = vpop.permute.xlu0 %246
      %248 = vrot.lane.b32.xlu0 %v228, 127
      %v249 = vpop.permute.xlu0 %248
      %250 = vrot.lane.b32.xlu0 %v229, 127
      %v251 = vpop.permute.xlu0 %250
      %252 = vrot.lane.b32.xlu0 %v230, 127
      %v253 = vpop.permute.xlu0 %252
      %254 = vrot.lane.b32.xlu0 %v231, 127
      %v255 = vpop.permute.xlu0 %254
      %256 = vrot.lane.b32.xlu0 %v232, 127
      %v257 = vpop.permute.xlu0 %256
      %258 = vrot.lane.b32.xlu0 %v233, 127
      %v259 = vpop.permute.xlu0 %258
      %260 = vrot.lane.b32.xlu0 %v234, 127
      %v261 = vpop.permute.xlu0 %260
      %262 = vrot.lane.b32.xlu0 %v235, 127
      %v263 = vpop.permute.xlu0 %262
      %264 = vrot.lane.b32.xlu0 %v236, 127
      %v265 = vpop.permute.xlu0 %264
      %266 = vrot.lane.b32.xlu0 %v237, 127
      %v267 = vpop.permute.xlu0 %266
      %268 = vrot.lane.b32.xlu0 %v238, 127
      %v269 = vpop.permute.xlu0 %268
      %270 = vrot.lane.b32.xlu0 %v239, 127
      %v271 = vpop.permute.xlu0 %270
      %v272 = vlaneseq
      %v273 = vand.u32 %v272, 127
      %v274 = vadd.s32 %v273, 128
      %275 = vset.pattern.permute.xlu0 0
      %276 = vperm.xlu0 %275, %v224
      %v277 = vpop.permute.xlu0 %276
      %278 = vset.pattern.permute.xlu0 0
      %279 = vperm.xlu0 %278, %v225
      %v280 = vpop.permute.xlu0 %279
      %281 = vset.pattern.permute.xlu0 0
      %282 = vperm.xlu0 %281, %v226
      %v283 = vpop.permute.xlu0 %282
      %284 = vset.pattern.permute.xlu0 0
      %285 = vperm.xlu0 %284, %v227
      %v286 = vpop.permute.xlu0 %285
      %287 = vset.pattern.permute.xlu0 0
      %288 = vperm.xlu0 %287, %v228
      %v289 = vpop.permute.xlu0 %288
      %290 = vset.pattern.permute.xlu0 0
      %291 = vperm.xlu0 %290, %v229
      %v292 = vpop.permute.xlu0 %291
      %293 = vset.pattern.permute.xlu0 0
      %294 = vperm.xlu0 %293, %v230
      %v295 = vpop.permute.xlu0 %294
      %296 = vset.pattern.permute.xlu0 0
      %297 = vperm.xlu0 %296, %v231
      %v298 = vpop.permute.xlu0 %297
      %299 = vset.pattern.permute.xlu0 0
      %300 = vperm.xlu0 %299, %v232
      %v301 = vpop.permute.xlu0 %300
      %302 = vset.pattern.permute.xlu0 0
      %303 = vperm.xlu0 %302, %v233
      %v304 = vpop.permute.xlu0 %303
      %305 = vset.pattern.permute.xlu0 0
      %306 = vperm.xlu0 %305, %v234
      %v307 = vpop.permute.xlu0 %306
      %308 = vset.pattern.permute.xlu0 0
      %309 = vperm.xlu0 %308, %v235
      %v310 = vpop.permute.xlu0 %309
      %311 = vset.pattern.permute.xlu0 0
      %312 = vperm.xlu0 %311, %v236
      %v313 = vpop.permute.xlu0 %312
      %314 = vset.pattern.permute.xlu0 0
      %315 = vperm.xlu0 %314, %v237
      %v316 = vpop.permute.xlu0 %315
      %317 = vset.pattern.permute.xlu0 0
      %318 = vperm.xlu0 %317, %v238
      %v319 = vpop.permute.xlu0 %318
      %320 = vset.pattern.permute.xlu0 0
      %321 = vperm.xlu0 %320, %v239
      %v322 = vpop.permute.xlu0 %321
      %323 = vset.pattern.permute.xlu0 0
      %324 = vperm.xlu0 %323, %v241
      %v325 = vpop.permute.xlu0 %324
      %326 = vset.pattern.permute.xlu0 0
      %327 = vperm.xlu0 %326, %v243
      %v328 = vpop.permute.xlu0 %327
      %329 = vset.pattern.permute.xlu0 0
      %330 = vperm.xlu0 %329, %v245
      %v331 = vpop.permute.xlu0 %330
      %332 = vset.pattern.permute.xlu0 0
      %333 = vperm.xlu0 %332, %v247
      %v334 = vpop.permute.xlu0 %333
      %335 = vset.pattern.permute.xlu0 0
      %336 = vperm.xlu0 %335, %v249
      %v337 = vpop.permute.xlu0 %336
      %338 = vset.pattern.permute.xlu0 0
      %339 = vperm.xlu0 %338, %v251
      %v340 = vpop.permute.xlu0 %339
      %341 = vset.pattern.permute.xlu0 0
      %342 = vperm.xlu0 %341, %v253
      %v343 = vpop.permute.xlu0 %342
      %344 = vset.pattern.permute.xlu0 0
      %345 = vperm.xlu0 %344, %v255
      %v346 = vpop.permute.xlu0 %345
      %347 = vset.pattern.permute.xlu0 0
      %348 = vperm.xlu0 %347, %v257
      %v349 = vpop.permute.xlu0 %348
      %350 = vset.pattern.permute.xlu0 0
      %351 = vperm.xlu0 %350, %v259
      %v352 = vpop.permute.xlu0 %351
      %353 = vset.pattern.permute.xlu0 0
      %354 = vperm.xlu0 %353, %v261
      %v355 = vpop.permute.xlu0 %354
      %356 = vset.pattern.permute.xlu0 0
      %357 = vperm.xlu0 %356, %v263
      %v358 = vpop.permute.xlu0 %357
      %359 = vset.pattern.permute.xlu0 0
      %360 = vperm.xlu0 %359, %v265
      %v361 = vpop.permute.xlu0 %360
      %362 = vset.pattern.permute.xlu0 0
      %363 = vperm.xlu0 %362, %v267
      %v364 = vpop.permute.xlu0 %363
      %365 = vset.pattern.permute.xlu0 0
      %366 = vperm.xlu0 %365, %v269
      %v367 = vpop.permute.xlu0 %366
      %368 = vset.pattern.permute.xlu0 0
      %369 = vperm.xlu0 %368, %v271
      %v370 = vpop.permute.xlu0 %369
      %vm371 = vcmp.eq.s32.totalorder %v273, %v277
      %vm372 = vcmp.eq.s32.totalorder %v274, %v277
      %vm373 = vcmp.eq.s32.totalorder %v273, %v280
      %vm374 = vcmp.eq.s32.totalorder %v274, %v280
      %vm375 = vcmp.eq.s32.totalorder %v273, %v283
      %vm376 = vcmp.eq.s32.totalorder %v274, %v283
      %vm377 = vcmp.eq.s32.totalorder %v273, %v286
      %vm378 = vcmp.eq.s32.totalorder %v274, %v286
      %vm379 = vcmp.eq.s32.totalorder %v273, %v289
      %vm380 = vcmp.eq.s32.totalorder %v274, %v289
      %vm381 = vcmp.eq.s32.totalorder %v273, %v292
      %vm382 = vcmp.eq.s32.totalorder %v274, %v292
      %vm383 = vcmp.eq.s32.totalorder %v273, %v295
      %vm384 = vcmp.eq.s32.totalorder %v274, %v295
      %vm385 = vcmp.eq.s32.totalorder %v273, %v298
      %vm386 = vcmp.eq.s32.totalorder %v274, %v298
      %vm387 = vcmp.eq.s32.totalorder %v273, %v301
      %vm388 = vcmp.eq.s32.totalorder %v274, %v301
      %vm389 = vcmp.eq.s32.totalorder %v273, %v304
      %vm390 = vcmp.eq.s32.totalorder %v274, %v304
      %vm391 = vcmp.eq.s32.totalorder %v273, %v307
      %vm392 = vcmp.eq.s32.totalorder %v274, %v307
      %vm393 = vcmp.eq.s32.totalorder %v273, %v310
      %vm394 = vcmp.eq.s32.totalorder %v274, %v310
      %vm395 = vcmp.eq.s32.totalorder %v273, %v313
      %vm396 = vcmp.eq.s32.totalorder %v274, %v313
      %vm397 = vcmp.eq.s32.totalorder %v273, %v316
      %vm398 = vcmp.eq.s32.totalorder %v274, %v316
      %vm399 = vcmp.eq.s32.totalorder %v273, %v319
      %vm400 = vcmp.eq.s32.totalorder %v274, %v319
      %vm401 = vcmp.eq.s32.totalorder %v273, %v322
      %vm402 = vcmp.eq.s32.totalorder %v274, %v322
      %vm403 = vcmp.eq.s32.totalorder %v273, %v325
      %vm404 = vcmp.eq.s32.totalorder %v274, %v325
      %vm405 = vcmp.eq.s32.totalorder %v273, %v328
      %vm406 = vcmp.eq.s32.totalorder %v274, %v328
      %vm407 = vcmp.eq.s32.totalorder %v273, %v331
      %vm408 = vcmp.eq.s32.totalorder %v274, %v331
      %vm409 = vcmp.eq.s32.totalorder %v273, %v334
      %vm410 = vcmp.eq.s32.totalorder %v274, %v334
      %vm411 = vcmp.eq.s32.totalorder %v273, %v337
      %vm412 = vcmp.eq.s32.totalorder %v274, %v337
      %vm413 = vcmp.eq.s32.totalorder %v273, %v340
      %vm414 = vcmp.eq.s32.totalorder %v274, %v340
      %vm415 = vcmp.eq.s32.totalorder %v273, %v343
      %vm416 = vcmp.eq.s32.totalorder %v274, %v343
      %vm417 = vcmp.eq.s32.totalorder %v273, %v346
      %vm418 = vcmp.eq.s32.totalorder %v274, %v346
      %vm419 = vcmp.eq.s32.totalorder %v273, %v349
      %vm420 = vcmp.eq.s32.totalorder %v274, %v349
      %vm421 = vcmp.eq.s32.totalorder %v273, %v352
      %vm422 = vcmp.eq.s32.totalorder %v274, %v352
      %vm423 = vcmp.eq.s32.totalorder %v273, %v355
      %vm424 = vcmp.eq.s32.totalorder %v274, %v355
      %vm425 = vcmp.eq.s32.totalorder %v273, %v358
      %vm426 = vcmp.eq.s32.totalorder %v274, %v358
      %vm427 = vcmp.eq.s32.totalorder %v273, %v361
      %vm428 = vcmp.eq.s32.totalorder %v274, %v361
      %vm429 = vcmp.eq.s32.totalorder %v273, %v364
      %vm430 = vcmp.eq.s32.totalorder %v274, %v364
      %vm431 = vcmp.eq.s32.totalorder %v273, %v367
      %vm432 = vcmp.eq.s32.totalorder %v274, %v367
      %vm433 = vcmp.eq.s32.totalorder %v273, %v370
      %vm434 = vcmp.eq.s32.totalorder %v274, %v370
      %v435 = vsel %vm371, 1, 0
      %v436 = vsel %vm372, 1, 0
      %v437 = vsel %vm373, 1, 0
      %v438 = vsel %vm374, 1, 0
      %v439 = vsel %vm375, 1, 0
      %v440 = vsel %vm376, 1, 0
      %v441 = vsel %vm377, 1, 0
      %v442 = vsel %vm378, 1, 0
      %v443 = vsel %vm379, 1, 0
      %v444 = vsel %vm380, 1, 0
      %v445 = vsel %vm381, 1, 0
      %v446 = vsel %vm382, 1, 0
      %v447 = vsel %vm383, 1, 0
      %v448 = vsel %vm384, 1, 0
      %v449 = vsel %vm385, 1, 0
      %v450 = vsel %vm386, 1, 0
      %v451 = vsel %vm387, 1, 0
      %v452 = vsel %vm388, 1, 0
      %v453 = vsel %vm389, 1, 0
      %v454 = vsel %vm390, 1, 0
      %v455 = vsel %vm391, 1, 0
      %v456 = vsel %vm392, 1, 0
      %v457 = vsel %vm393, 1, 0
      %v458 = vsel %vm394, 1, 0
      %v459 = vsel %vm395, 1, 0
      %v460 = vsel %vm396, 1, 0
      %v461 = vsel %vm397, 1, 0
      %v462 = vsel %vm398, 1, 0
      %v463 = vsel %vm399, 1, 0
      %v464 = vsel %vm400, 1, 0
      %v465 = vsel %vm401, 1, 0
      %v466 = vsel %vm402, 1, 0
      %v467 = vsel %vm403, 1, 0
      %v468 = vsel %vm404, 1, 0
      %v469 = vsel %vm405, 1, 0
      %v470 = vsel %vm406, 1, 0
      %v471 = vsel %vm407, 1, 0
      %v472 = vsel %vm408, 1, 0
      %v473 = vsel %vm409, 1, 0
      %v474 = vsel %vm410, 1, 0
      %v475 = vsel %vm411, 1, 0
      %v476 = vsel %vm412, 1, 0
      %v477 = vsel %vm413, 1, 0
      %v478 = vsel %vm414, 1, 0
      %v479 = vsel %vm415, 1, 0
      %v480 = vsel %vm416, 1, 0
      %v481 = vsel %vm417, 1, 0
      %v482 = vsel %vm418, 1, 0
      %v483 = vsel %vm419, 1, 0
      %v484 = vsel %vm420, 1, 0
      %v485 = vsel %vm421, 1, 0
      %v486 = vsel %vm422, 1, 0
      %v487 = vsel %vm423, 1, 0
      %v488 = vsel %vm424, 1, 0
      %v489 = vsel %vm425, 1, 0
      %v490 = vsel %vm426, 1, 0
      %v491 = vsel %vm427, 1, 0
      %v492 = vsel %vm428, 1, 0
      %v493 = vsel %vm429, 1, 0
      %v494 = vsel %vm430, 1, 0
      %v495 = vsel %vm431, 1, 0
      %v496 = vsel %vm432, 1, 0
      %v497 = vsel %vm433, 1, 0
      %v498 = vsel %vm434, 1, 0
      %v499 = vcvt.s32.f32 %v435
      %v500 = vcvt.s32.f32 %v436
      %v501 = vcvt.s32.f32 %v437
      %v502 = vcvt.s32.f32 %v438
      %v503 = vcvt.s32.f32 %v439
      %v504 = vcvt.s32.f32 %v440
      %v505 = vcvt.s32.f32 %v441
      %v506 = vcvt.s32.f32 %v442
      %v507 = vcvt.s32.f32 %v443
      %v508 = vcvt.s32.f32 %v444
      %v509 = vcvt.s32.f32 %v445
      %v510 = vcvt.s32.f32 %v446
      %v511 = vcvt.s32.f32 %v447
      %v512 = vcvt.s32.f32 %v448
      %v513 = vcvt.s32.f32 %v449
      %v514 = vcvt.s32.f32 %v450
      %v515 = vcvt.s32.f32 %v451
      %v516 = vcvt.s32.f32 %v452
      %v517 = vcvt.s32.f32 %v453
      %v518 = vcvt.s32.f32 %v454
      %v519 = vcvt.s32.f32 %v455
      %v520 = vcvt.s32.f32 %v456
      %v521 = vcvt.s32.f32 %v457
      %v522 = vcvt.s32.f32 %v458
      %v523 = vcvt.s32.f32 %v459
      %v524 = vcvt.s32.f32 %v460
      %v525 = vcvt.s32.f32 %v461
      %v526 = vcvt.s32.f32 %v462
      %v527 = vcvt.s32.f32 %v463
      %v528 = vcvt.s32.f32 %v464
      %v529 = vcvt.s32.f32 %v465
      %v530 = vcvt.s32.f32 %v466
      %v531 = vcvt.s32.f32 %v467
      %v532 = vcvt.s32.f32 %v468
      %v533 = vcvt.s32.f32 %v469
      %v534 = vcvt.s32.f32 %v470
      %v535 = vcvt.s32.f32 %v471
      %v536 = vcvt.s32.f32 %v472
      %v537 = vcvt.s32.f32 %v473
      %v538 = vcvt.s32.f32 %v474
      %v539 = vcvt.s32.f32 %v475
      %v540 = vcvt.s32.f32 %v476
      %v541 = vcvt.s32.f32 %v477
      %v542 = vcvt.s32.f32 %v478
      %v543 = vcvt.s32.f32 %v479
      %v544 = vcvt.s32.f32 %v480
      %v545 = vcvt.s32.f32 %v481
      %v546 = vcvt.s32.f32 %v482
      %v547 = vcvt.s32.f32 %v483
      %v548 = vcvt.s32.f32 %v484
      %v549 = vcvt.s32.f32 %v485
      %v550 = vcvt.s32.f32 %v486
      %v551 = vcvt.s32.f32 %v487
      %v552 = vcvt.s32.f32 %v488
      %v553 = vcvt.s32.f32 %v489
      %v554 = vcvt.s32.f32 %v490
      %v555 = vcvt.s32.f32 %v491
      %v556 = vcvt.s32.f32 %v492
      %v557 = vcvt.s32.f32 %v493
      %v558 = vcvt.s32.f32 %v494
      %v559 = vcvt.s32.f32 %v495
      %v560 = vcvt.s32.f32 %v496
      %v561 = vcvt.s32.f32 %v497
      %v562 = vcvt.s32.f32 %v498
      %v563 = vpack.c.bf16 %v501, %v499
      %v564 = vpack.c.bf16 %v502, %v500
      %v565 = vpack.c.bf16 %v505, %v503
      %v566 = vpack.c.bf16 %v506, %v504
      %v567 = vpack.c.bf16 %v509, %v507
      %v568 = vpack.c.bf16 %v510, %v508
      %v569 = vpack.c.bf16 %v513, %v511
      %v570 = vpack.c.bf16 %v514, %v512
      %v571 = vpack.c.bf16 %v517, %v515
      %v572 = vpack.c.bf16 %v518, %v516
      %v573 = vpack.c.bf16 %v521, %v519
      %v574 = vpack.c.bf16 %v522, %v520
      %v575 = vpack.c.bf16 %v525, %v523
      %v576 = vpack.c.bf16 %v526, %v524
      %v577 = vpack.c.bf16 %v529, %v527
      %v578 = vpack.c.bf16 %v530, %v528
      %v579 = vpack.c.bf16 %v533, %v531
      %v580 = vpack.c.bf16 %v534, %v532
      %v581 = vpack.c.bf16 %v537, %v535
      %v582 = vpack.c.bf16 %v538, %v536
      %v583 = vpack.c.bf16 %v541, %v539
      %v584 = vpack.c.bf16 %v542, %v540
      %v585 = vpack.c.bf16 %v545, %v543
      %v586 = vpack.c.bf16 %v546, %v544
      %v587 = vpack.c.bf16 %v549, %v547
      %v588 = vpack.c.bf16 %v550, %v548
      %v589 = vpack.c.bf16 %v553, %v551
      %v590 = vpack.c.bf16 %v554, %v552
      %v591 = vpack.c.bf16 %v557, %v555
      %v592 = vpack.c.bf16 %v558, %v556
      %v593 = vpack.c.bf16 %v561, %v559
      %v594 = vpack.c.bf16 %v562, %v560
      %v595 = vld [vmem:[%s1] sm:$0xf]
      %v596 = vld [vmem:[%s1 + $0x4] sm:$0xf]
      %v597 = vld [vmem:[%s1 + $0x8] sm:$0xf]
      %v598 = vld [vmem:[%s1 + $0xc] sm:$0xf]
      %v599 = vld [vmem:[%s1 + $0x10] sm:$0xf]
      %v600 = vld [vmem:[%s1 + $0x14] sm:$0xf]
      %v601 = vld [vmem:[%s1 + $0x18] sm:$0xf]
      %v602 = vld [vmem:[%s1 + $0x1c] sm:$0xf]
      %v603 = vld [vmem:[%s1 + $0x20] sm:$0xf]
      %v604 = vld [vmem:[%s1 + $0x24] sm:$0xf]
      %v605 = vld [vmem:[%s1 + $0x28] sm:$0xf]
      %v606 = vld [vmem:[%s1 + $0x2c] sm:$0xf]
      %v607 = vld [vmem:[%s1 + $0x30] sm:$0xf]
      %v608 = vld [vmem:[%s1 + $0x34] sm:$0xf]
      %v609 = vld [vmem:[%s1 + $0x38] sm:$0xf]
      %v610 = vld [vmem:[%s1 + $0x3c] sm:$0xf]
      %v611 = vld [vmem:[%s1 + $0x40] sm:$0xf]
      %v612 = vld [vmem:[%s1 + $0x44] sm:$0xf]
      %v613 = vld [vmem:[%s1 + $0x48] sm:$0xf]
      %v614 = vld [vmem:[%s1 + $0x4c] sm:$0xf]
      %v615 = vld [vmem:[%s1 + $0x50] sm:$0xf]
      %v616 = vld [vmem:[%s1 + $0x54] sm:$0xf]
      %v617 = vld [vmem:[%s1 + $0x58] sm:$0xf]
      %v618 = vld [vmem:[%s1 + $0x5c] sm:$0xf]
      %v619 = vld [vmem:[%s1 + $0x60] sm:$0xf]
      %v620 = vld [vmem:[%s1 + $0x64] sm:$0xf]
      %v621 = vld [vmem:[%s1 + $0x68] sm:$0xf]
      %v622 = vld [vmem:[%s1 + $0x6c] sm:$0xf]
      %v623 = vld [vmem:[%s1 + $0x70] sm:$0xf]
      %v624 = vld [vmem:[%s1 + $0x74] sm:$0xf]
      %v625 = vld [vmem:[%s1 + $0x78] sm:$0xf]
      %v626 = vld [vmem:[%s1 + $0x7c] sm:$0xf]
      %v659 = vunpack.c.l.b16 %v595
      %v660 = vunpack.c.l.b16 %v596
      %v661 = vunpack.c.l.b16 %v597
      %v662 = vunpack.c.l.b16 %v598
      %v663 = vunpack.c.l.b16 %v599
      %v664 = vunpack.c.l.b16 %v600
      %v665 = vunpack.c.l.b16 %v601
      %v666 = vunpack.c.l.b16 %v602
      %v667 = vunpack.c.l.b16 %v603
      %v668 = vunpack.c.l.b16 %v604
      %v669 = vunpack.c.l.b16 %v605
      %v670 = vunpack.c.l.b16 %v606
      %v671 = vunpack.c.l.b16 %v607
      %v672 = vunpack.c.l.b16 %v608
      %v673 = vunpack.c.l.b16 %v609
      %v674 = vunpack.c.l.b16 %v610
      %v675 = vunpack.c.l.b16 %v611
      %v676 = vunpack.c.l.b16 %v612
      %v677 = vunpack.c.l.b16 %v613
      %v678 = vunpack.c.l.b16 %v614
      %v679 = vunpack.c.l.b16 %v615
      %v680 = vunpack.c.l.b16 %v616
      %v681 = vunpack.c.l.b16 %v617
      %v682 = vunpack.c.l.b16 %v618
      %v683 = vunpack.c.l.b16 %v619
      %v684 = vunpack.c.l.b16 %v620
      %v685 = vunpack.c.l.b16 %v621
      %v686 = vunpack.c.l.b16 %v622
      %v687 = vunpack.c.l.b16 %v623
      %v688 = vunpack.c.l.b16 %v624
      %v689 = vunpack.c.l.b16 %v625
      %v690 = vunpack.c.l.b16 %v626
      %v691 = vpack.c.b16 %v660, %v659
      %v692 = vpack.c.b16 %v662, %v661
      %v693 = vpack.c.b16 %v664, %v663
      %v694 = vpack.c.b16 %v666, %v665
      %v695 = vpack.c.b16 %v668, %v667
      %v696 = vpack.c.b16 %v670, %v669
      %v697 = vpack.c.b16 %v672, %v671
      %v698 = vpack.c.b16 %v674, %v673
      %v699 = vpack.c.b16 %v676, %v675
      %v700 = vpack.c.b16 %v678, %v677
      %v701 = vpack.c.b16 %v680, %v679
      %v702 = vpack.c.b16 %v682, %v681
      %v703 = vpack.c.b16 %v684, %v683
      %v704 = vpack.c.b16 %v686, %v685
      %v705 = vpack.c.b16 %v688, %v687
      %v706 = vpack.c.b16 %v690, %v689
      %723 = vmatprep.subr.bf16.mxu0 0
      %724 = vmatpush1.bf16.msra.mxu0 %v691
      %725 = vmatprep.subr.bf16.mxu0 0
      %726 = vmatpush1.bf16.msra.mxu0 %v692
      %727 = vmatprep.subr.bf16.mxu0 0
      %728 = vmatpush1.bf16.msra.mxu0 %v693
      %729 = vmatprep.subr.bf16.mxu0 0
      %730 = vmatpush1.bf16.msra.mxu0 %v694
      %731 = vmatprep.subr.bf16.mxu0 0
      %732 = vmatpush1.bf16.msra.mxu0 %v695
      %733 = vmatprep.subr.bf16.mxu0 0
      %734 = vmatpush1.bf16.msra.mxu0 %v696
      %735 = vmatprep.subr.bf16.mxu0 0
      %736 = vmatpush1.bf16.msra.mxu0 %v697
      %737 = vmatprep.subr.bf16.mxu0 0
      %738 = vmatpush1.bf16.msra.mxu0 %v698
      %739 = vmatprep.subr.bf16.mxu0 0
      %740 = vmatpush1.bf16.msra.mxu0 %v699
      %741 = vmatprep.subr.bf16.mxu0 0
      %742 = vmatpush1.bf16.msra.mxu0 %v700
      %743 = vmatprep.subr.bf16.mxu0 0
      %744 = vmatpush1.bf16.msra.mxu0 %v701
      %745 = vmatprep.subr.bf16.mxu0 0
      %746 = vmatpush1.bf16.msra.mxu0 %v702
      %747 = vmatprep.subr.bf16.mxu0 0
      %748 = vmatpush1.bf16.msra.mxu0 %v703
      %749 = vmatprep.subr.bf16.mxu0 0
      %750 = vmatpush1.bf16.msra.mxu0 %v704
      %751 = vmatprep.subr.bf16.mxu0 0
      %752 = vmatpush1.bf16.msra.mxu0 %v705
      %753 = vmatprep.subr.bf16.mxu0 0
      %754 = vmatpush1.bf16.msra.mxu0 %v706
      %755 = vmatprep.mubr.bf16.mxu0 %v564
      %756 = vmatmul.mubr.bf16.gmra.mrb[0].mxu0 %v563
      %v757 = vpop.f32.mrb[0].mxu0
      %v758 = vadd.f32 0.0, %v757
      %v759 = vpop.f32.mrb[0].mxu0
      %v760 = vpop.f32.mrb[0].mxu0
      %v761 = vadd.f32 0.0, %v760
      %v762 = vpop.f32.mrb[0].mxu0
      %763 = vmatprep.mubr.bf16.mxu0 %v566
      %764 = vmatmul.mubr.bf16.gmra.mrb[0].mxu0 %v565
      %v765 = vpop.f32.mrb[0].mxu0
      %v766 = vadd.f32 0.0, %v765
      %v767 = vpop.f32.mrb[0].mxu0
      %v768 = vpop.f32.mrb[0].mxu0
      %v769 = vadd.f32 0.0, %v768
      %v770 = vpop.f32.mrb[0].mxu0
      %771 = vmatprep.mubr.bf16.mxu0 %v568
      %772 = vmatmul.mubr.bf16.gmra.mrb[0].mxu0 %v567
      %v773 = vpop.f32.mrb[0].mxu0
      %v774 = vadd.f32 0.0, %v773
      %v775 = vpop.f32.mrb[0].mxu0
      %v776 = vpop.f32.mrb[0].mxu0
      %v777 = vadd.f32 0.0, %v776
      %v778 = vpop.f32.mrb[0].mxu0
      %779 = vmatprep.mubr.bf16.mxu0 %v570
      %780 = vmatmul.mubr.bf16.gmra.mrb[0].mxu0 %v569
      %v781 = vpop.f32.mrb[0].mxu0
      %v782 = vadd.f32 0.0, %v781
      %v783 = vpop.f32.mrb[0].mxu0
      %v784 = vpop.f32.mrb[0].mxu0
      %v785 = vadd.f32 0.0, %v784
      %v786 = vpop.f32.mrb[0].mxu0
      %787 = vmatprep.mubr.bf16.mxu0 %v572
      %788 = vmatmul.mubr.bf16.gmra.mrb[0].mxu0 %v571
      %v789 = vpop.f32.mrb[0].mxu0
      %v790 = vadd.f32 0.0, %v789
      %v791 = vpop.f32.mrb[0].mxu0
      %v792 = vpop.f32.mrb[0].mxu0
      %v793 = vadd.f32 0.0, %v792
      %v794 = vpop.f32.mrb[0].mxu0
      %795 = vmatprep.mubr.bf16.mxu0 %v574
      %796 = vmatmul.mubr.bf16.gmra.mrb[0].mxu0 %v573
      %v797 = vpop.f32.mrb[0].mxu0
      %v798 = vadd.f32 0.0, %v797
      %v799 = vpop.f32.mrb[0].mxu0
      %v800 = vpop.f32.mrb[0].mxu0
      %v801 = vadd.f32 0.0, %v800
      %v802 = vpop.f32.mrb[0].mxu0
      %803 = vmatprep.mubr.bf16.mxu0 %v576
      %804 = vmatmul.mubr.bf16.gmra.mrb[0].mxu0 %v575
      %v805 = vpop.f32.mrb[0].mxu0
      %v806 = vadd.f32 0.0, %v805
      %v807 = vpop.f32.mrb[0].mxu0
      %v808 = vpop.f32.mrb[0].mxu0
      %v809 = vadd.f32 0.0, %v808
      %v810 = vpop.f32.mrb[0].mxu0
      %811 = vmatprep.mubr.bf16.mxu0 %v578
      %812 = vmatmul.mubr.bf16.gmra.mrb[0].mxu0 %v577
      %v813 = vpop.f32.mrb[0].mxu0
      %v814 = vadd.f32 0.0, %v813
      %v815 = vpop.f32.mrb[0].mxu0
      %v816 = vpop.f32.mrb[0].mxu0
      %v817 = vadd.f32 0.0, %v816
      %v818 = vpop.f32.mrb[0].mxu0
      %819 = vmatprep.mubr.bf16.mxu0 %v580
      %820 = vmatmul.mubr.bf16.gmra.mrb[0].mxu0 %v579
      %v821 = vpop.f32.mrb[0].mxu0
      %v822 = vadd.f32 0.0, %v821
      %v823 = vpop.f32.mrb[0].mxu0
      %v824 = vpop.f32.mrb[0].mxu0
      %v825 = vadd.f32 0.0, %v824
      %v826 = vpop.f32.mrb[0].mxu0
      %827 = vmatprep.mubr.bf16.mxu0 %v582
      %828 = vmatmul.mubr.bf16.gmra.mrb[0].mxu0 %v581
      %v829 = vpop.f32.mrb[0].mxu0
      %v830 = vadd.f32 0.0, %v829
      %v831 = vpop.f32.mrb[0].mxu0
      %v832 = vpop.f32.mrb[0].mxu0
      %v833 = vadd.f32 0.0, %v832
      %v834 = vpop.f32.mrb[0].mxu0
      %835 = vmatprep.mubr.bf16.mxu0 %v584
      %836 = vmatmul.mubr.bf16.gmra.mrb[0].mxu0 %v583
      %v837 = vpop.f32.mrb[0].mxu0
      %v838 = vadd.f32 0.0, %v837
      %v839 = vpop.f32.mrb[0].mxu0
      %v840 = vpop.f32.mrb[0].mxu0
      %v841 = vadd.f32 0.0, %v840
      %v842 = vpop.f32.mrb[0].mxu0
      %843 = vmatprep.mubr.bf16.mxu0 %v586
      %844 = vmatmul.mubr.bf16.gmra.mrb[0].mxu0 %v585
      %v845 = vpop.f32.mrb[0].mxu0
      %v846 = vadd.f32 0.0, %v845
      %v847 = vpop.f32.mrb[0].mxu0
      %v848 = vpop.f32.mrb[0].mxu0
      %v849 = vadd.f32 0.0, %v848
      %v850 = vpop.f32.mrb[0].mxu0
      %851 = vmatprep.mubr.bf16.mxu0 %v588
      %852 = vmatmul.mubr.bf16.gmra.mrb[0].mxu0 %v587
      %v853 = vpop.f32.mrb[0].mxu0
      %v854 = vadd.f32 0.0, %v853
      %v855 = vpop.f32.mrb[0].mxu0
      %v856 = vpop.f32.mrb[0].mxu0
      %v857 = vadd.f32 0.0, %v856
      %v858 = vpop.f32.mrb[0].mxu0
      %859 = vmatprep.mubr.bf16.mxu0 %v590
      %860 = vmatmul.mubr.bf16.gmra.mrb[0].mxu0 %v589
      %v861 = vpop.f32.mrb[0].mxu0
      %v862 = vadd.f32 0.0, %v861
      %v863 = vpop.f32.mrb[0].mxu0
      %v864 = vpop.f32.mrb[0].mxu0
      %v865 = vadd.f32 0.0, %v864
      %v866 = vpop.f32.mrb[0].mxu0
      %867 = vmatprep.mubr.bf16.mxu0 %v592
      %868 = vmatmul.mubr.bf16.gmra.mrb[0].mxu0 %v591
      %v869 = vpop.f32.mrb[0].mxu0
      %v870 = vadd.f32 0.0, %v869
      %v871 = vpop.f32.mrb[0].mxu0
      %v872 = vpop.f32.mrb[0].mxu0
      %v873 = vadd.f32 0.0, %v872
      %v874 = vpop.f32.mrb[0].mxu0
      %875 = vmatprep.mubr.bf16.mxu0 %v594
      %876 = vmatmul.mubr.bf16.gmra.mrb[0].mxu0 %v593
      %v877 = vpop.f32.mrb[0].mxu0
      %v878 = vadd.f32 0.0, %v877
      %v879 = vpop.f32.mrb[0].mxu0
      %v880 = vpop.f32.mrb[0].mxu0
      %v881 = vadd.f32 0.0, %v880
      %v882 = vpop.f32.mrb[0].mxu0
      %883 = vdwg.mxu0
      %v884 = vld [vmem:[%s4] sm:$0x1]
      %v885 = vmul.f32 %v758, %v822
      %v886 = vmul.f32 %v761, %v825
      %v887 = vmul.f32 %v766, %v830
      %v888 = vmul.f32 %v769, %v833
      %v889 = vmul.f32 %v774, %v838
      %v890 = vmul.f32 %v777, %v841
      %v891 = vmul.f32 %v782, %v846
      %v892 = vmul.f32 %v785, %v849
      %v893 = vmul.f32 %v790, %v854
      %v894 = vmul.f32 %v793, %v857
      %v895 = vmul.f32 %v798, %v862
      %v896 = vmul.f32 %v801, %v865
      %v897 = vmul.f32 %v806, %v870
      %v898 = vmul.f32 %v809, %v873
      %v899 = vmul.f32 %v814, %v878
      %v900 = vmul.f32 %v817, %v881
      %v901 = vld [vmem:[%s2] sm:$0x1]
      %918 = vrot.lane.b32.xlu0 %v758, 112
      %v919 = vpop.permute.xlu0 %918
      %920 = vrot.lane.b32.xlu0 %v761, 112
      %v921 = vpop.permute.xlu0 %920
      %922 = vrot.lane.b32.xlu0 %v766, 112
      %v923 = vpop.permute.xlu0 %922
      %924 = vrot.lane.b32.xlu0 %v769, 112
      %v925 = vpop.permute.xlu0 %924
      %926 = vrot.lane.b32.xlu0 %v774, 112
      %v927 = vpop.permute.xlu0 %926
      %928 = vrot.lane.b32.xlu0 %v777, 112
      %v929 = vpop.permute.xlu0 %928
      %930 = vrot.lane.b32.xlu0 %v782, 112
      %v931 = vpop.permute.xlu0 %930
      %932 = vrot.lane.b32.xlu0 %v785, 112
      %v933 = vpop.permute.xlu0 %932
      %934 = vrot.lane.b32.xlu0 %v790, 112
      %v935 = vpop.permute.xlu0 %934
      %936 = vrot.lane.b32.xlu0 %v793, 112
      %v937 = vpop.permute.xlu0 %936
      %938 = vrot.lane.b32.xlu0 %v798, 112
      %v939 = vpop.permute.xlu0 %938
      %940 = vrot.lane.b32.xlu0 %v801, 112
      %v941 = vpop.permute.xlu0 %940
      %942 = vrot.lane.b32.xlu0 %v806, 112
      %v943 = vpop.permute.xlu0 %942
      %944 = vrot.lane.b32.xlu0 %v809, 112
      %v945 = vpop.permute.xlu0 %944
      %946 = vrot.lane.b32.xlu0 %v814, 112
      %v947 = vpop.permute.xlu0 %946
      %948 = vrot.lane.b32.xlu0 %v817, 112
      %v949 = vpop.permute.xlu0 %948
      %vm950 = vcmask 130048
      %v952 = vsel %vm950, %v901, 0
      %v954 = vsel %vm950, %v919, 0
      %v956 = vsel %vm950, %v921, 0
      %v958 = vsel %vm950, %v923, 0
      %v960 = vsel %vm950, %v925, 0
      %v962 = vsel %vm950, %v927, 0
      %v964 = vsel %vm950, %v929, 0
      %v966 = vsel %vm950, %v931, 0
      %v968 = vsel %vm950, %v933, 0
      %v970 = vsel %vm950, %v935, 0
      %v972 = vsel %vm950, %v937, 0
      %v974 = vsel %vm950, %v939, 0
      %v976 = vsel %vm950, %v941, 0
      %v978 = vsel %vm950, %v943, 0
      %v980 = vsel %vm950, %v945, 0
      %v982 = vsel %vm950, %v947, 0
      %v984 = vsel %vm950, %v949, 0
      %986 = vmatprep.subr.mxu0 0.0
      %987 = vmatpush1.xpose.msra.mxu0 %v954
      %988 = vmatprep.subr.mxu0 0.0
      %989 = vmatpush1.xpose.msra.mxu0 %v956
      %990 = vmatprep.subr.mxu0 0.0
      %991 = vmatpush1.xpose.msra.mxu0 %v958
      %992 = vmatprep.subr.mxu0 0.0
      %993 = vmatpush1.xpose.msra.mxu0 %v960
      %994 = vmatprep.subr.mxu0 0.0
      %995 = vmatpush1.xpose.msra.mxu0 %v962
      %996 = vmatprep.subr.mxu0 0.0
      %997 = vmatpush1.xpose.msra.mxu0 %v964
      %998 = vmatprep.subr.mxu0 0.0
      %999 = vmatpush1.xpose.msra.mxu0 %v966
      %1000 = vmatprep.subr.mxu0 0.0
      %1001 = vmatpush1.xpose.msra.mxu0 %v968
      %1002 = vmatprep.subr.mxu0 0.0
      %1003 = vmatpush1.xpose.msra.mxu0 %v970
      %1004 = vmatprep.subr.mxu0 0.0
      %1005 = vmatpush1.xpose.msra.mxu0 %v972
      %1006 = vmatprep.subr.mxu0 0.0
      %1007 = vmatpush1.xpose.msra.mxu0 %v974
      %1008 = vmatprep.subr.mxu0 0.0
      %1009 = vmatpush1.xpose.msra.mxu0 %v976
      %1010 = vmatprep.subr.mxu0 0.0
      %1011 = vmatpush1.xpose.msra.mxu0 %v978
      %1012 = vmatprep.subr.mxu0 0.0
      %1013 = vmatpush1.xpose.msra.mxu0 %v980
      %1014 = vmatprep.subr.mxu0 0.0
      %1015 = vmatpush1.xpose.msra.mxu0 %v982
      %1016 = vmatprep.subr.mxu0 0.0
      %1017 = vmatpush1.xpose.msra.mxu0 %v984
      %1018 = vmatprep.subr.mxu0 0.0
      %1019 = vmatpush1.xpose.msra.mxu0 0.0
      %1020 = vmatprep.subr.mxu0 0.0
      %1021 = vmatpush1.xpose.msra.mxu0 0.0
      %1022 = vmatprep.subr.mxu0 0.0
      %1023 = vmatpush1.xpose.msra.mxu0 0.0
      %1024 = vmatprep.subr.mxu0 0.0
      %1025 = vmatpush1.xpose.msra.mxu0 0.0
      %1026 = vmatprep.subr.mxu0 0.0
      %1027 = vmatpush1.xpose.msra.mxu0 0.0
      %1028 = vmatprep.subr.mxu0 0.0
      %1029 = vmatpush1.xpose.msra.mxu0 0.0
      %1030 = vmatprep.subr.mxu0 0.0
      %1031 = vmatpush1.xpose.msra.mxu0 0.0
      %1032 = vmatprep.subr.mxu0 0.0
      %1033 = vmatpush1.xpose.msra.mxu0 0.0
      %1034 = vmatprep.subr.mxu0 0.0
      %1035 = vmatpush1.xpose.msra.mxu0 0.0
      %1036 = vmatprep.subr.mxu0 0.0
      %1037 = vmatpush1.xpose.msra.mxu0 0.0
      %1038 = vmatprep.subr.mxu0 0.0
      %1039 = vmatpush1.xpose.msra.mxu0 0.0
      %1040 = vmatprep.subr.mxu0 0.0
      %1041 = vmatpush1.xpose.msra.mxu0 0.0
      %1042 = vmatprep.subr.mxu0 0.0
      %1043 = vmatpush1.xpose.msra.mxu0 0.0
      %1044 = vmatprep.subr.mxu0 0.0
      %1045 = vmatpush1.xpose.msra.mxu0 0.0
      %1046 = vmatprep.subr.mxu0 0.0
      %1047 = vmatpush1.xpose.msra.mxu0 0.0
      %1048 = vmatprep.subr.mxu0 0.0
      %1049 = vmatpush1.xpose.msra.mxu0 0.0
      %1050 = vmatprep.mubr.f32.mxu0 0.0
      %1051 = vmatmul.mubr.f32.gmra.mrb[0].mxu0 %v952
      %v1052 = vpop.f32.mrb[0].mxu0
      %v1053 = vadd.f32 0.0, %v1052
      %v1054 = vpop.f32.mrb[0].mxu0
      %1055 = vdwg.mxu0
      %v1057 = vsel %vm950, %v884, 0
      %v1060 = vsel %vm950, %v885, 0
      %v1063 = vsel %vm950, %v886, 0
      %v1066 = vsel %vm950, %v887, 0
      %v1069 = vsel %vm950, %v888, 0
      %v1072 = vsel %vm950, %v889, 0
      %v1075 = vsel %vm950, %v890, 0
      %v1078 = vsel %vm950, %v891, 0
      %v1081 = vsel %vm950, %v892, 0
      %v1084 = vsel %vm950, %v893, 0
      %v1087 = vsel %vm950, %v894, 0
      %v1090 = vsel %vm950, %v895, 0
      %v1093 = vsel %vm950, %v896, 0
      %v1096 = vsel %vm950, %v897, 0
      %v1099 = vsel %vm950, %v898, 0
      %v1102 = vsel %vm950, %v899, 0
      %v1105 = vsel %vm950, %v900, 0
      %1107 = vmatprep.subr.mxu0 0.0
      %1108 = vmatpush1.xpose.msra.mxu0 %v1060
      %1109 = vmatprep.subr.mxu0 0.0
      %1110 = vmatpush1.xpose.msra.mxu0 %v1063
      %1111 = vmatprep.subr.mxu0 0.0
      %1112 = vmatpush1.xpose.msra.mxu0 %v1066
      %1113 = vmatprep.subr.mxu0 0.0
      %1114 = vmatpush1.xpose.msra.mxu0 %v1069
      %1115 = vmatprep.subr.mxu0 0.0
      %1116 = vmatpush1.xpose.msra.mxu0 %v1072
      %1117 = vmatprep.subr.mxu0 0.0
      %1118 = vmatpush1.xpose.msra.mxu0 %v1075
      %1119 = vmatprep.subr.mxu0 0.0
      %1120 = vmatpush1.xpose.msra.mxu0 %v1078
      %1121 = vmatprep.subr.mxu0 0.0
      %1122 = vmatpush1.xpose.msra.mxu0 %v1081
      %1123 = vmatprep.subr.mxu0 0.0
      %1124 = vmatpush1.xpose.msra.mxu0 %v1084
      %1125 = vmatprep.subr.mxu0 0.0
      %1126 = vmatpush1.xpose.msra.mxu0 %v1087
      %1127 = vmatprep.subr.mxu0 0.0
      %1128 = vmatpush1.xpose.msra.mxu0 %v1090
      %1129 = vmatprep.subr.mxu0 0.0
      %1130 = vmatpush1.xpose.msra.mxu0 %v1093
      %1131 = vmatprep.subr.mxu0 0.0
      %1132 = vmatpush1.xpose.msra.mxu0 %v1096
      %1133 = vmatprep.subr.mxu0 0.0
      %1134 = vmatpush1.xpose.msra.mxu0 %v1099
      %1135 = vmatprep.subr.mxu0 0.0
      %1136 = vmatpush1.xpose.msra.mxu0 %v1102
      %1137 = vmatprep.subr.mxu0 0.0
      %1138 = vmatpush1.xpose.msra.mxu0 %v1105
      %1139 = vmatprep.subr.mxu0 0.0
      %1140 = vmatpush1.xpose.msra.mxu0 0.0
      %1141 = vmatprep.subr.mxu0 0.0
      %1142 = vmatpush1.xpose.msra.mxu0 0.0
      %1143 = vmatprep.subr.mxu0 0.0
      %1144 = vmatpush1.xpose.msra.mxu0 0.0
      %1145 = vmatprep.subr.mxu0 0.0
      %1146 = vmatpush1.xpose.msra.mxu0 0.0
      %1147 = vmatprep.subr.mxu0 0.0
      %1148 = vmatpush1.xpose.msra.mxu0 0.0
      %1149 = vmatprep.subr.mxu0 0.0
      %1150 = vmatpush1.xpose.msra.mxu0 0.0
      %1151 = vmatprep.subr.mxu0 0.0
      %1152 = vmatpush1.xpose.msra.mxu0 0.0
      %1153 = vmatprep.subr.mxu0 0.0
      %1154 = vmatpush1.xpose.msra.mxu0 0.0
      %1155 = vmatprep.subr.mxu0 0.0
      %1156 = vmatpush1.xpose.msra.mxu0 0.0
      %1157 = vmatprep.subr.mxu0 0.0
      %1158 = vmatpush1.xpose.msra.mxu0 0.0
      %1159 = vmatprep.subr.mxu0 0.0
      %1160 = vmatpush1.xpose.msra.mxu0 0.0
      %1161 = vmatprep.subr.mxu0 0.0
      %1162 = vmatpush1.xpose.msra.mxu0 0.0
      %1163 = vmatprep.subr.mxu0 0.0
      %1164 = vmatpush1.xpose.msra.mxu0 0.0
      %1165 = vmatprep.subr.mxu0 0.0
      %1166 = vmatpush1.xpose.msra.mxu0 0.0
      %1167 = vmatprep.subr.mxu0 0.0
      %1168 = vmatpush1.xpose.msra.mxu0 0.0
      %1169 = vmatprep.subr.mxu0 0.0
      %1170 = vmatpush1.xpose.msra.mxu0 0.0
      %1171 = vmatprep.mubr.f32.mxu0 0.0
      %1172 = vmatmul.mubr.f32.gmra.mrb[0].mxu0 %v1057
      %v1173 = vpop.f32.mrb[0].mxu0
      %v1174 = vadd.f32 %v1053, %v1173
      %v1175 = vpop.f32.mrb[0].mxu0
      %1176 = vdwg.mxu0
      %v1177 = vld [vmem:[%s3] sm:$0x1]
      %1194 = vrot.lane.b32.xlu0 %v822, 112
      %v1195 = vpop.permute.xlu0 %1194
      %1196 = vrot.lane.b32.xlu0 %v825, 112
      %v1197 = vpop.permute.xlu0 %1196
      %1198 = vrot.lane.b32.xlu0 %v830, 112
      %v1199 = vpop.permute.xlu0 %1198
      %1200 = vrot.lane.b32.xlu0 %v833, 112
      %v1201 = vpop.permute.xlu0 %1200
      %1202 = vrot.lane.b32.xlu0 %v838, 112
      %v1203 = vpop.permute.xlu0 %1202
      %1204 = vrot.lane.b32.xlu0 %v841, 112
      %v1205 = vpop.permute.xlu0 %1204
      %1206 = vrot.lane.b32.xlu0 %v846, 112
      %v1207 = vpop.permute.xlu0 %1206
      %1208 = vrot.lane.b32.xlu0 %v849, 112
      %v1209 = vpop.permute.xlu0 %1208
      %1210 = vrot.lane.b32.xlu0 %v854, 112
      %v1211 = vpop.permute.xlu0 %1210
      %1212 = vrot.lane.b32.xlu0 %v857, 112
      %v1213 = vpop.permute.xlu0 %1212
      %1214 = vrot.lane.b32.xlu0 %v862, 112
      %v1215 = vpop.permute.xlu0 %1214
      %1216 = vrot.lane.b32.xlu0 %v865, 112
      %v1217 = vpop.permute.xlu0 %1216
      %1218 = vrot.lane.b32.xlu0 %v870, 112
      %v1219 = vpop.permute.xlu0 %1218
      %1220 = vrot.lane.b32.xlu0 %v873, 112
      %v1221 = vpop.permute.xlu0 %1220
      %1222 = vrot.lane.b32.xlu0 %v878, 112
      %v1223 = vpop.permute.xlu0 %1222
      %1224 = vrot.lane.b32.xlu0 %v881, 112
      %v1225 = vpop.permute.xlu0 %1224
      %v1227 = vsel %vm950, %v1177, 0
      %v1229 = vsel %vm950, %v1195, 0
      %v1231 = vsel %vm950, %v1197, 0
      %v1233 = vsel %vm950, %v1199, 0
      %v1235 = vsel %vm950, %v1201, 0
      %v1237 = vsel %vm950, %v1203, 0
      %v1239 = vsel %vm950, %v1205, 0
      %v1241 = vsel %vm950, %v1207, 0
      %v1243 = vsel %vm950, %v1209, 0
      %v1245 = vsel %vm950, %v1211, 0
      %v1247 = vsel %vm950, %v1213, 0
      %v1249 = vsel %vm950, %v1215, 0
      %v1251 = vsel %vm950, %v1217, 0
      %v1253 = vsel %vm950, %v1219, 0
      %v1255 = vsel %vm950, %v1221, 0
      %v1257 = vsel %vm950, %v1223, 0
      %v1259 = vsel %vm950, %v1225, 0
      %1261 = vmatprep.subr.mxu0 0.0
      %1262 = vmatpush1.xpose.msra.mxu0 %v1229
      %1263 = vmatprep.subr.mxu0 0.0
      %1264 = vmatpush1.xpose.msra.mxu0 %v1231
      %1265 = vmatprep.subr.mxu0 0.0
      %1266 = vmatpush1.xpose.msra.mxu0 %v1233
      %1267 = vmatprep.subr.mxu0 0.0
      %1268 = vmatpush1.xpose.msra.mxu0 %v1235
      %1269 = vmatprep.subr.mxu0 0.0
      %1270 = vmatpush1.xpose.msra.mxu0 %v1237
      %1271 = vmatprep.subr.mxu0 0.0
      %1272 = vmatpush1.xpose.msra.mxu0 %v1239
      %1273 = vmatprep.subr.mxu0 0.0
      %1274 = vmatpush1.xpose.msra.mxu0 %v1241
      %1275 = vmatprep.subr.mxu0 0.0
      %1276 = vmatpush1.xpose.msra.mxu0 %v1243
      %1277 = vmatprep.subr.mxu0 0.0
      %1278 = vmatpush1.xpose.msra.mxu0 %v1245
      %1279 = vmatprep.subr.mxu0 0.0
      %1280 = vmatpush1.xpose.msra.mxu0 %v1247
      %1281 = vmatprep.subr.mxu0 0.0
      %1282 = vmatpush1.xpose.msra.mxu0 %v1249
      %1283 = vmatprep.subr.mxu0 0.0
      %1284 = vmatpush1.xpose.msra.mxu0 %v1251
      %1285 = vmatprep.subr.mxu0 0.0
      %1286 = vmatpush1.xpose.msra.mxu0 %v1253
      %1287 = vmatprep.subr.mxu0 0.0
      %1288 = vmatpush1.xpose.msra.mxu0 %v1255
      %1289 = vmatprep.subr.mxu0 0.0
      %1290 = vmatpush1.xpose.msra.mxu0 %v1257
      %1291 = vmatprep.subr.mxu0 0.0
      %1292 = vmatpush1.xpose.msra.mxu0 %v1259
      %1293 = vmatprep.subr.mxu0 0.0
      %1294 = vmatpush1.xpose.msra.mxu0 0.0
      %1295 = vmatprep.subr.mxu0 0.0
      %1296 = vmatpush1.xpose.msra.mxu0 0.0
      %1297 = vmatprep.subr.mxu0 0.0
      %1298 = vmatpush1.xpose.msra.mxu0 0.0
      %1299 = vmatprep.subr.mxu0 0.0
      %1300 = vmatpush1.xpose.msra.mxu0 0.0
      %1301 = vmatprep.subr.mxu0 0.0
      %1302 = vmatpush1.xpose.msra.mxu0 0.0
      %1303 = vmatprep.subr.mxu0 0.0
      %1304 = vmatpush1.xpose.msra.mxu0 0.0
      %1305 = vmatprep.subr.mxu0 0.0
      %1306 = vmatpush1.xpose.msra.mxu0 0.0
      %1307 = vmatprep.subr.mxu0 0.0
      %1308 = vmatpush1.xpose.msra.mxu0 0.0
      %1309 = vmatprep.subr.mxu0 0.0
      %1310 = vmatpush1.xpose.msra.mxu0 0.0
      %1311 = vmatprep.subr.mxu0 0.0
      %1312 = vmatpush1.xpose.msra.mxu0 0.0
      %1313 = vmatprep.subr.mxu0 0.0
      %1314 = vmatpush1.xpose.msra.mxu0 0.0
      %1315 = vmatprep.subr.mxu0 0.0
      %1316 = vmatpush1.xpose.msra.mxu0 0.0
      %1317 = vmatprep.subr.mxu0 0.0
      %1318 = vmatpush1.xpose.msra.mxu0 0.0
      %1319 = vmatprep.subr.mxu0 0.0
      %1320 = vmatpush1.xpose.msra.mxu0 0.0
      %1321 = vmatprep.subr.mxu0 0.0
      %1322 = vmatpush1.xpose.msra.mxu0 0.0
      %1323 = vmatprep.subr.mxu0 0.0
      %1324 = vmatpush1.xpose.msra.mxu0 0.0
      %1325 = vmatprep.mubr.f32.mxu0 0.0
      %1326 = vmatmul.mubr.f32.gmra.mrb[0].mxu0 %v1227
      %v1327 = vpop.f32.mrb[0].mxu0
      %v1328 = vadd.f32 0.0, %v1327
      %v1329 = vpop.f32.mrb[0].mxu0
      %1330 = vdwg.mxu0
      %v1331 = vadd.f32 %v1174, %v1328
      %v1332 = vxor.u32 %v1331, 2147483648
      %v1333 = vmul.f32 %v1332, 1.442695
      %v1334 = vpow.pop %v1333
      %v1335 = vadd.f32 %v1334, 1.0
      %v1336 = vrcp.pop %v1335
      %v1337 = vmul.f32 1.0, %v1336
      %1338 = vst [vmem:[%s222] sm:$0x1] %v1337
      %p1339 = scmp.lt.s32.totalorder %s16, 1
      %s1340 = scalar_select %p1339, %s16, 1
      %s1341 = scalar_lea.vmem %s5, %s1340
      // Predicated region
      $region41: #{vgae_forward.5} parent=39 // pred_check
        %p1342 = pneg %p144
      $region42: #{vgae_forward.5} parent=39 // pred_check_branch
        %1344 = sbr.rel (%p1342) target = $region44
      $region43: #{vgae_forward.5} parent=39 // pred_region
        _
      $region44: #{vgae_forward.5} parent=39 // pred_fallthru
        _
    $region40: #{vgae_forward.5} parent=5 // pred_fallthru
      _
    %p1345 = scmp.le.s32.totalorder 2, %s11
    // Predicated region
    $region45: #{vgae_forward.5} parent=5 // pred_check
      %p1346 = pneg %p1345
    $region46: #{vgae_forward.5} parent=5 // pred_check_branch
      %1348 = sbr.rel (%p1346) target = $region48
    $region47: #{vgae_forward.5} parent=5 // pred_region
      %s1349 = ssub.s32 %s11, 2
      // Predicated region
      $region49: #{vgae_forward.5} parent=47 // pred_check
        %p1350 = pneg %p150
      $region50: #{vgae_forward.5} parent=47 // pred_check_branch
        %1352 = sbr.rel (%p1350) target = $region52
      $region51: #{vgae_forward.5} parent=47 // pred_region
        %p1353 = scmp.lt.s32.totalorder %s17, 1
        %s1354 = scalar_select %p1353, %s17, 1
        %s1355 = scalar_lea.vmem %s5, %s1354
      $region52: #{vgae_forward.5} parent=47 // pred_fallthru
        _
    $region48: #{vgae_forward.5} parent=5 // pred_fallthru
      _
  $region6: #{vgae_forward.5} parent=0 // loop_footer
    %s15 = sadd.s32 1, %s11
  $region7: #{vgae_forward.5} parent=0 // loop_footer_branch
    %10 = sbr.rel target = $region3
  $region8: #{vgae_forward.5} parent=0 // loop_exit
    _

</llo_original>
